<compile_context>
chip_gen: v7x
topology: tpu7x:2x2x1
jax: 0.10.0
libtpu: 0.0.40
codegen_flags: <defaults>
</compile_context>

<pallas_src>
import functools

import jax
import jax.numpy as jnp
from jax import lax
from jax.experimental import pallas as pl
from jax.experimental.pallas import tpu as pltpu

NEG_SLOPE = 0.01   # nn.LeakyReLU default negative_slope
EPS = 1e-6         # GroupNorm eps explicitly set in the module
NUM_GROUPS = 16


def concat_gn_kernel(x_ref, w_ref, g_ref, mask_ref, gamma_ref, beta_ref,
                     o_ref, patch_ref, *, H, W, Cin, Cout, group_size):
    """One sample per grid step (NCHW-native, lane-dense layout).

    x_ref:     (1, Cin, NFLAT)    flattened zero-padded image, bf16
                                  NFLAT = (H+2)*(W+2) + 2
    w_ref:     (Cout, 9*Cin)      conv weight, tap-major / ci-minor, bf16
    g_ref:     (Cout, Cout)       group-membership matrix (f32, 0/1)
    mask_ref:  (1, NCOLS)         1.0 on real columns, 0.0 on phantom columns
    gamma_ref: (Cout, 1)          GroupNorm scale
    beta_ref:  (Cout, 1)          GroupNorm shift
    o_ref:     (1, Cout, NCOLS)   output, NCOLS = H*(W+2) (phantom cols kept)
    patch_ref: (9*Cin, NCOLS)     bf16 VMEM scratch for the stacked patches
    """
    Wp = W + 2
    ncols = H * Wp

    # --- build the stacked 9-tap patch matrix ------------------------------
    # Tap t = (dy, dx) of output column q = y*Wp + x needs flat input index
    # q + dy*Wp + dx, so each tap is one contiguous lane window of the
    # flattened padded image.  Rows are stored tap-major to match w_ref.
    for dy in range(3):
        for dx in range(3):
            t = dy * 3 + dx
            off = dy * Wp + dx
            patch_ref[t * Cin:(t + 1) * Cin, :] = x_ref[0, :, off:off + ncols]

    # --- 3x3 conv as a single fat MXU matmul (bf16 in, f32 accumulate) -----
    acc = jnp.dot(w_ref[...], patch_ref[...],
                  preferred_element_type=jnp.float32)        # (Cout, ncols)

    # --- GroupNorm(16): stats over (channels-in-group, H, W), two-pass -----
    mask = mask_ref[...]                                     # (1, ncols) f32
    n = float(group_size * H * W)
    sum_c = jnp.sum(acc * mask, axis=1, keepdims=True)       # (Cout, 1)
    # broadcast per-group sums to every member channel via the 0/1 membership
    # matrix (tiny (Cout,Cout)@(Cout,1) matmul; avoids cross-sublane reshapes)
    mean = jnp.dot(g_ref[...], sum_c,
                   preferred_element_type=jnp.float32) / n
    centered = acc - mean
    sq_c = jnp.sum(centered * centered * mask, axis=1, keepdims=True)
    var = jnp.dot(g_ref[...], sq_c,
                  preferred_element_type=jnp.float32) / n    # biased var
    inv_std = lax.rsqrt(var + EPS)

    y = centered * inv_std * gamma_ref[...] + beta_ref[...]
    y = jnp.where(y >= 0, y, NEG_SLOPE * y)                  # LeakyReLU

    o_ref[...] = y.reshape(1, Cout, ncols).astype(o_ref.dtype)


@jax.jit
def concat_gn_forward(x_nchw, skip_nchw, w_oihw, gamma, beta):
    """Wrapper: channel concat + spatial zero-pad + flatten, then the kernel."""
    xcat = jnp.concatenate([x_nchw, skip_nchw], axis=1)      # (B, Cin, H, W)
    B, Cin, H, W = xcat.shape
    Cout = w_oihw.shape[0]
    assert Cout % NUM_GROUPS == 0
    group_size = Cout // NUM_GROUPS
    Wp = W + 2
    ncols = H * Wp                       # conv evaluated on an (H, W+2) grid
    nflat = (H + 2) * Wp + 2             # +2 so the last tap window is in range

    # zero-pad spatially, flatten the padded image, pad the flat tail by 2.
    xpad = jnp.pad(xcat, ((0, 0), (0, 0), (1, 1), (1, 1)))
    xflat = xpad.reshape(B, Cin, (H + 2) * Wp)
    xflat = jnp.pad(xflat, ((0, 0), (0, 0), (0, 2))).astype(jnp.bfloat16)

    # conv weight (Cout, Cin, 3, 3) -> (Cout, 9*Cin), index (dy*3+dx)*Cin + ci.
    w2 = jnp.transpose(w_oihw, (0, 2, 3, 1)).reshape(Cout, 9 * Cin)
    w2 = w2.astype(jnp.bfloat16)

    # group-membership matrix: G[c, c'] = 1 iff c and c' share a GN group.
    grp = jnp.arange(Cout) // group_size
    G = (grp[:, None] == grp[None, :]).astype(jnp.float32)

    # validity mask over the (H, W+2) column grid: x-positions >= W are phantom.
    col = jnp.arange(ncols) % Wp
    mask = (col < W).astype(jnp.float32).reshape(1, ncols)

    gamma2 = gamma.reshape(Cout, 1).astype(jnp.float32)
    beta2 = beta.reshape(Cout, 1).astype(jnp.float32)

    kernel = functools.partial(concat_gn_kernel, H=H, W=W, Cin=Cin, Cout=Cout,
                               group_size=group_size)

    out_flat = pl.pallas_call(
        kernel,
        out_shape=jax.ShapeDtypeStruct((B, Cout, ncols), jnp.float32),
        grid_spec=pltpu.PrefetchScalarGridSpec(
            num_scalar_prefetch=0,
            grid=(B,),
            in_specs=[
                pl.BlockSpec((1, Cin, nflat), lambda b: (b, 0, 0)),
                pl.BlockSpec((Cout, 9 * Cin), lambda b: (0, 0)),
                pl.BlockSpec((Cout, Cout), lambda b: (0, 0)),
                pl.BlockSpec((1, ncols), lambda b: (0, 0)),
                pl.BlockSpec((Cout, 1), lambda b: (0, 0)),
                pl.BlockSpec((Cout, 1), lambda b: (0, 0)),
            ],
            out_specs=pl.BlockSpec((1, Cout, ncols), lambda b: (b, 0, 0)),
            scratch_shapes=[pltpu.VMEM((9 * Cin, ncols), jnp.bfloat16)],
        ),
        compiler_params=pltpu.CompilerParams(
            dimension_semantics=("parallel",)),   # v7x: one sample per TC
    )(xflat, w2, G, mask, gamma2, beta2)

    # drop the 2 phantom columns per image row; already NCHW — no transpose.
    out = out_flat.reshape(B, Cout, H, Wp)[:, :, :, :W]
    return out


def reference_forward(x, skip, w_oihw, gamma, beta):
    """Pure-JAX reference.  The conv operands are cast to bf16 (f32 accumulate)
    to match the kernel's MXU precision; everything else is f32."""
    xcat = jnp.concatenate([x, skip], axis=1)
    conv = lax.conv_general_dilated(
        xcat.astype(jnp.bfloat16), w_oihw.astype(jnp.bfloat16),
        window_strides=(1, 1), padding="SAME",
        dimension_numbers=("NCHW", "OIHW", "NCHW"),
        preferred_element_type=jnp.float32)
    B, C, H, W = conv.shape
    g = conv.reshape(B, NUM_GROUPS, C // NUM_GROUPS, H, W)
    mean = g.mean(axis=(2, 3, 4), keepdims=True)
    var = g.var(axis=(2, 3, 4), keepdims=True)
    g = (g - mean) * lax.rsqrt(var + EPS)
    out = g.reshape(B, C, H, W) * gamma.reshape(1, C, 1, 1) \
          + beta.reshape(1, C, 1, 1)
    return jnp.where(out >= 0, out, NEG_SLOPE * out)


if __name__ == "__main__":
    # Small shapes consistent with the module: x (2,16,16,16) + skip
    # (2,16,16,16) -> in_c = 32, out_c = 32 (divisible by the 16 GN groups).
    B, Cx, Cs, H, W = 2, 16, 16, 16, 16
    in_c = Cx + Cs
    out_c = 32

    key = jax.random.PRNGKey(0)
    kx, ks, kw, kg, kb = jax.random.split(key, 5)
    x = jax.random.normal(kx, (B, Cx, H, W), jnp.float32)
    skip = jax.random.normal(ks, (B, Cs, H, W), jnp.float32)

    # Deterministic synthetic parameters (Conv2d bias=False; GroupNorm affine).
    w_oihw = 0.1 * jax.random.normal(kw, (out_c, in_c, 3, 3), jnp.float32)
    gamma = 1.0 + 0.05 * jax.random.normal(kg, (out_c,), jnp.float32)
    beta = 0.05 * jax.random.normal(kb, (out_c,), jnp.float32)

    out = jax.block_until_ready(concat_gn_forward(x, skip, w_oihw, gamma, beta))
    ref = jax.block_until_ready(reference_forward(x, skip, w_oihw, gamma, beta))

    assert out.shape == (B, out_c, H, W), out.shape
    max_err = float(jnp.max(jnp.abs(out - ref)))
    assert jnp.allclose(out, ref, atol=2e-3, rtol=2e-3), max_err
    print("KERNEL_OK")
</pallas_src>

<mosaic_0001>
module attributes {stable_mosaic.version = 11 : i64} {
  func.func @concat_gn_kernel(%arg0: i32, %arg1: memref<1x32x326xbf16, #tpu.memory_space<vmem>>, %arg2: memref<32x288xbf16, #tpu.memory_space<vmem>>, %arg3: memref<32x32xf32, #tpu.memory_space<vmem>>, %arg4: memref<1x288xf32, #tpu.memory_space<vmem>>, %arg5: memref<32x1xf32, #tpu.memory_space<vmem>>, %arg6: memref<32x1xf32, #tpu.memory_space<vmem>>, %arg7: memref<1x32x288xf32, #tpu.memory_space<vmem>>, %arg8: memref<288x288xbf16, #tpu.memory_space<vmem>>) attributes {dimension_semantics = [#tpu.dimension_semantics<parallel>], iteration_bounds = array<i64: 2>, scalar_prefetch = 0 : i64, scratch_operands = 1 : i64, tpu.core_type = #tpu.core_type<tc>, window_params = [{transform_indices = @transform_0, window_bounds = array<i64: 1, 32, 326>}, {pipeline_mode = #tpu.pipeline_mode<synchronous>, transform_indices = @transform_1, window_bounds = array<i64: 32, 288>}, {pipeline_mode = #tpu.pipeline_mode<synchronous>, transform_indices = @transform_2, window_bounds = array<i64: 32, 32>}, {pipeline_mode = #tpu.pipeline_mode<synchronous>, transform_indices = @transform_3, window_bounds = array<i64: 1, 288>}, {pipeline_mode = #tpu.pipeline_mode<synchronous>, transform_indices = @transform_4, window_bounds = array<i64: 32, 1>}, {pipeline_mode = #tpu.pipeline_mode<synchronous>, transform_indices = @transform_5, window_bounds = array<i64: 32, 1>}, {transform_indices = @transform_6, window_bounds = array<i64: 1, 32, 288>}]} {
    %c0 = arith.constant 0 : index
    %c0_0 = arith.constant 0 : index
    %c0_1 = arith.constant 0 : index
    %0 = vector.load %arg1[%c0, %c0_0, %c0_1] : memref<1x32x326xbf16, #tpu.memory_space<vmem>>, vector<1x32x288xbf16>
    %1 = vector.shape_cast %0 : vector<1x32x288xbf16> to vector<32x288xbf16>
    %c0_2 = arith.constant 0 : index
    %c0_3 = arith.constant 0 : index
    %2 = vector.load %arg8[%c0_2, %c0_3] : memref<288x288xbf16, #tpu.memory_space<vmem>>, vector<32x288xbf16>
    tpu.vector_store %arg8[%c0_2, %c0_3], %1 {strides = array<i32>} : memref<288x288xbf16, #tpu.memory_space<vmem>>, vector<32x288xbf16>,
    %c0_4 = arith.constant 0 : index
    %c0_5 = arith.constant 0 : index
    %c1 = arith.constant 1 : index
    %3 = vector.load %arg1[%c0_4, %c0_5, %c1] : memref<1x32x326xbf16, #tpu.memory_space<vmem>>, vector<1x32x288xbf16>
    %4 = vector.shape_cast %3 : vector<1x32x288xbf16> to vector<32x288xbf16>
    %c32 = arith.constant 32 : index
    %c0_6 = arith.constant 0 : index
    %5 = vector.load %arg8[%c32, %c0_6] : memref<288x288xbf16, #tpu.memory_space<vmem>>, vector<32x288xbf16>
    tpu.vector_store %arg8[%c32, %c0_6], %4 {strides = array<i32>} : memref<288x288xbf16, #tpu.memory_space<vmem>>, vector<32x288xbf16>,
    %c0_7 = arith.constant 0 : index
    %c0_8 = arith.constant 0 : index
    %c2 = arith.constant 2 : index
    %6 = vector.load %arg1[%c0_7, %c0_8, %c2] : memref<1x32x326xbf16, #tpu.memory_space<vmem>>, vector<1x32x288xbf16>
    %7 = vector.shape_cast %6 : vector<1x32x288xbf16> to vector<32x288xbf16>
    %c64 = arith.constant 64 : index
    %c0_9 = arith.constant 0 : index
    %8 = vector.load %arg8[%c64, %c0_9] : memref<288x288xbf16, #tpu.memory_space<vmem>>, vector<32x288xbf16>
    tpu.vector_store %arg8[%c64, %c0_9], %7 {strides = array<i32>} : memref<288x288xbf16, #tpu.memory_space<vmem>>, vector<32x288xbf16>,
    %c0_10 = arith.constant 0 : index
    %c0_11 = arith.constant 0 : index
    %c18 = arith.constant 18 : index
    %9 = vector.load %arg1[%c0_10, %c0_11, %c18] : memref<1x32x326xbf16, #tpu.memory_space<vmem>>, vector<1x32x288xbf16>
    %10 = vector.shape_cast %9 : vector<1x32x288xbf16> to vector<32x288xbf16>
    %c96 = arith.constant 96 : index
    %c0_12 = arith.constant 0 : index
    %11 = vector.load %arg8[%c96, %c0_12] : memref<288x288xbf16, #tpu.memory_space<vmem>>, vector<32x288xbf16>
    tpu.vector_store %arg8[%c96, %c0_12], %10 {strides = array<i32>} : memref<288x288xbf16, #tpu.memory_space<vmem>>, vector<32x288xbf16>,
    %c0_13 = arith.constant 0 : index
    %c0_14 = arith.constant 0 : index
    %c19 = arith.constant 19 : index
    %12 = vector.load %arg1[%c0_13, %c0_14, %c19] : memref<1x32x326xbf16, #tpu.memory_space<vmem>>, vector<1x32x288xbf16>
    %13 = vector.shape_cast %12 : vector<1x32x288xbf16> to vector<32x288xbf16>
    %c128 = arith.constant 128 : index
    %c0_15 = arith.constant 0 : index
    %14 = vector.load %arg8[%c128, %c0_15] : memref<288x288xbf16, #tpu.memory_space<vmem>>, vector<32x288xbf16>
    tpu.vector_store %arg8[%c128, %c0_15], %13 {strides = array<i32>} : memref<288x288xbf16, #tpu.memory_space<vmem>>, vector<32x288xbf16>,
    %c0_16 = arith.constant 0 : index
    %c0_17 = arith.constant 0 : index
    %c20 = arith.constant 20 : index
    %15 = vector.load %arg1[%c0_16, %c0_17, %c20] : memref<1x32x326xbf16, #tpu.memory_space<vmem>>, vector<1x32x288xbf16>
    %16 = vector.shape_cast %15 : vector<1x32x288xbf16> to vector<32x288xbf16>
    %c160 = arith.constant 160 : index
    %c0_18 = arith.constant 0 : index
    %17 = vector.load %arg8[%c160, %c0_18] : memref<288x288xbf16, #tpu.memory_space<vmem>>, vector<32x288xbf16>
    tpu.vector_store %arg8[%c160, %c0_18], %16 {strides = array<i32>} : memref<288x288xbf16, #tpu.memory_space<vmem>>, vector<32x288xbf16>,
    %c0_19 = arith.constant 0 : index
    %c0_20 = arith.constant 0 : index
    %c36 = arith.constant 36 : index
    %18 = vector.load %arg1[%c0_19, %c0_20, %c36] : memref<1x32x326xbf16, #tpu.memory_space<vmem>>, vector<1x32x288xbf16>
    %19 = vector.shape_cast %18 : vector<1x32x288xbf16> to vector<32x288xbf16>
    %c192 = arith.constant 192 : index
    %c0_21 = arith.constant 0 : index
    %20 = vector.load %arg8[%c192, %c0_21] : memref<288x288xbf16, #tpu.memory_space<vmem>>, vector<32x288xbf16>
    tpu.vector_store %arg8[%c192, %c0_21], %19 {strides = array<i32>} : memref<288x288xbf16, #tpu.memory_space<vmem>>, vector<32x288xbf16>,
    %c0_22 = arith.constant 0 : index
    %c0_23 = arith.constant 0 : index
    %c37 = arith.constant 37 : index
    %21 = vector.load %arg1[%c0_22, %c0_23, %c37] : memref<1x32x326xbf16, #tpu.memory_space<vmem>>, vector<1x32x288xbf16>
    %22 = vector.shape_cast %21 : vector<1x32x288xbf16> to vector<32x288xbf16>
    %c224 = arith.constant 224 : index
    %c0_24 = arith.constant 0 : index
    %23 = vector.load %arg8[%c224, %c0_24] : memref<288x288xbf16, #tpu.memory_space<vmem>>, vector<32x288xbf16>
    tpu.vector_store %arg8[%c224, %c0_24], %22 {strides = array<i32>} : memref<288x288xbf16, #tpu.memory_space<vmem>>, vector<32x288xbf16>,
    %c0_25 = arith.constant 0 : index
    %c0_26 = arith.constant 0 : index
    %c38 = arith.constant 38 : index
    %24 = vector.load %arg1[%c0_25, %c0_26, %c38] : memref<1x32x326xbf16, #tpu.memory_space<vmem>>, vector<1x32x288xbf16>
    %25 = vector.shape_cast %24 : vector<1x32x288xbf16> to vector<32x288xbf16>
    %c256 = arith.constant 256 : index
    %c0_27 = arith.constant 0 : index
    %26 = vector.load %arg8[%c256, %c0_27] : memref<288x288xbf16, #tpu.memory_space<vmem>>, vector<32x288xbf16>
    tpu.vector_store %arg8[%c256, %c0_27], %25 {strides = array<i32>} : memref<288x288xbf16, #tpu.memory_space<vmem>>, vector<32x288xbf16>,
    %c0_28 = arith.constant 0 : index
    %c0_29 = arith.constant 0 : index
    %27 = vector.load %arg2[%c0_28, %c0_29] : memref<32x288xbf16, #tpu.memory_space<vmem>>, vector<32x288xbf16>
    %c0_30 = arith.constant 0 : index
    %c0_31 = arith.constant 0 : index
    %28 = vector.load %arg8[%c0_30, %c0_31] : memref<288x288xbf16, #tpu.memory_space<vmem>>, vector<288x288xbf16>
    %cst = arith.constant dense<0.000000e+00> : vector<32x288xf32>
    %29 = tpu.matmul %27, %28, %cst {dimension_numbers = #tpu.dot_dimension_numbers<[1], [0], [0], [1], [0, 0, 1, 1], [], []>} : vector<32x288xbf16>, vector<288x288xbf16>, vector<32x288xf32> -> vector<32x288xf32>
    %c0_32 = arith.constant 0 : index
    %c0_33 = arith.constant 0 : index
    %30 = vector.load %arg4[%c0_32, %c0_33] : memref<1x288xf32, #tpu.memory_space<vmem>>, vector<1x288xf32>
    %31 = vector.broadcast %30 : vector<1x288xf32> to vector<32x288xf32>
    %32 = arith.mulf %29, %31 : vector<32x288xf32>
    %cst_34 = arith.constant dense<0.000000e+00> : vector<32xf32>
    %33 = vector.multi_reduction <add>, %32, %cst_34 [1] : vector<32x288xf32> to vector<32xf32>
    %34 = vector.shape_cast %33 : vector<32xf32> to vector<32x1xf32>
    %c0_35 = arith.constant 0 : index
    %c0_36 = arith.constant 0 : index
    %35 = vector.load %arg3[%c0_35, %c0_36] : memref<32x32xf32, #tpu.memory_space<vmem>>, vector<32x32xf32>
    %cst_37 = arith.constant dense<0.000000e+00> : vector<32x1xf32>
    %36 = tpu.matmul %35, %34, %cst_37 {dimension_numbers = #tpu.dot_dimension_numbers<[1], [0], [0], [1], [0, 0, 1, 1], [], []>} : vector<32x32xf32>, vector<32x1xf32>, vector<32x1xf32> -> vector<32x1xf32>
    %cst_38 = arith.constant 5.120000e+02 : f32
    %37 = vector.broadcast %cst_38 : f32 to vector<32x1xf32>
    %38 = arith.divf %36, %37 : vector<32x1xf32>
    %39 = vector.broadcast %38 : vector<32x1xf32> to vector<32x288xf32>
    %40 = arith.subf %29, %39 : vector<32x288xf32>
    %41 = arith.mulf %40, %40 : vector<32x288xf32>
    %42 = vector.broadcast %30 : vector<1x288xf32> to vector<32x288xf32>
    %43 = arith.mulf %41, %42 : vector<32x288xf32>
    %cst_39 = arith.constant dense<0.000000e+00> : vector<32xf32>
    %44 = vector.multi_reduction <add>, %43, %cst_39 [1] : vector<32x288xf32> to vector<32xf32>
    %45 = vector.shape_cast %44 : vector<32xf32> to vector<32x1xf32>
    %c0_40 = arith.constant 0 : index
    %c0_41 = arith.constant 0 : index
    %46 = vector.load %arg3[%c0_40, %c0_41] : memref<32x32xf32, #tpu.memory_space<vmem>>, vector<32x32xf32>
    %cst_42 = arith.constant dense<0.000000e+00> : vector<32x1xf32>
    %47 = tpu.matmul %46, %45, %cst_42 {dimension_numbers = #tpu.dot_dimension_numbers<[1], [0], [0], [1], [0, 0, 1, 1], [], []>} : vector<32x32xf32>, vector<32x1xf32>, vector<32x1xf32> -> vector<32x1xf32>
    %cst_43 = arith.constant 5.120000e+02 : f32
    %48 = vector.broadcast %cst_43 : f32 to vector<32x1xf32>
    %49 = arith.divf %47, %48 : vector<32x1xf32>
    %cst_44 = arith.constant 9.99999997E-7 : f32
    %50 = vector.broadcast %cst_44 : f32 to vector<32x1xf32>
    %51 = arith.addf %49, %50 : vector<32x1xf32>
    %52 = math.rsqrt %51 : vector<32x1xf32>
    %53 = vector.broadcast %52 : vector<32x1xf32> to vector<32x288xf32>
    %54 = arith.mulf %40, %53 : vector<32x288xf32>
    %c0_45 = arith.constant 0 : index
    %c0_46 = arith.constant 0 : index
    %55 = vector.load %arg5[%c0_45, %c0_46] : memref<32x1xf32, #tpu.memory_space<vmem>>, vector<32x1xf32>
    %56 = vector.broadcast %55 : vector<32x1xf32> to vector<32x288xf32>
    %57 = arith.mulf %54, %56 : vector<32x288xf32>
    %c0_47 = arith.constant 0 : index
    %c0_48 = arith.constant 0 : index
    %58 = vector.load %arg6[%c0_47, %c0_48] : memref<32x1xf32, #tpu.memory_space<vmem>>, vector<32x1xf32>
    %59 = vector.broadcast %58 : vector<32x1xf32> to vector<32x288xf32>
    %60 = arith.addf %57, %59 : vector<32x288xf32>
    %cst_49 = arith.constant 0.000000e+00 : f32
    %61 = vector.broadcast %cst_49 : f32 to vector<32x288xf32>
    %62 = arith.cmpf oge, %60, %61 : vector<32x288xf32>
    %cst_50 = arith.constant 0.00999999977 : f32
    %63 = vector.broadcast %cst_50 : f32 to vector<32x288xf32>
    %64 = arith.mulf %63, %60 : vector<32x288xf32>
    %65 = arith.select %62, %60, %64 : vector<32x288xi1>, vector<32x288xf32>
    %66 = vector.shape_cast %65 : vector<32x288xf32> to vector<1x32x288xf32>
    %c0_51 = arith.constant 0 : index
    %c0_52 = arith.constant 0 : index
    %c0_53 = arith.constant 0 : index
    %67 = vector.load %arg7[%c0_51, %c0_52, %c0_53] : memref<1x32x288xf32, #tpu.memory_space<vmem>>, vector<1x32x288xf32>
    tpu.vector_store %arg7[%c0_51, %c0_52, %c0_53], %66 {strides = array<i32>} : memref<1x32x288xf32, #tpu.memory_space<vmem>>, vector<1x32x288xf32>,
    return
  }
  func.func @transform_0(%arg0: i32) -> (i32, i32, i32) {
    %c0_i32 = arith.constant 0 : i32
    %c0_i32_0 = arith.constant 0 : i32
    %c0_i32_1 = arith.constant 0 : i32
    return %arg0, %c0_i32, %c0_i32_0 : i32, i32, i32
  }
  func.func @transform_1(%arg0: i32) -> (i32, i32) {
    %c0_i32 = arith.constant 0 : i32
    %c0_i32_0 = arith.constant 0 : i32
    %c0_i32_1 = arith.constant 0 : i32
    return %c0_i32, %c0_i32_0 : i32, i32
  }
  func.func @transform_2(%arg0: i32) -> (i32, i32) {
    %c0_i32 = arith.constant 0 : i32
    %c0_i32_0 = arith.constant 0 : i32
    %c0_i32_1 = arith.constant 0 : i32
    return %c0_i32, %c0_i32_0 : i32, i32
  }
  func.func @transform_3(%arg0: i32) -> (i32, i32) {
    %c0_i32 = arith.constant 0 : i32
    %c0_i32_0 = arith.constant 0 : i32
    %c0_i32_1 = arith.constant 0 : i32
    return %c0_i32, %c0_i32_0 : i32, i32
  }
  func.func @transform_4(%arg0: i32) -> (i32, i32) {
    %c0_i32 = arith.constant 0 : i32
    %c0_i32_0 = arith.constant 0 : i32
    %c0_i32_1 = arith.constant 0 : i32
    return %c0_i32, %c0_i32_0 : i32, i32
  }
  func.func @transform_5(%arg0: i32) -> (i32, i32) {
    %c0_i32 = arith.constant 0 : i32
    %c0_i32_0 = arith.constant 0 : i32
    %c0_i32_1 = arith.constant 0 : i32
    return %c0_i32, %c0_i32_0 : i32, i32
  }
  func.func @transform_6(%arg0: i32) -> (i32, i32, i32) {
    %c0_i32 = arith.constant 0 : i32
    %c0_i32_0 = arith.constant 0 : i32
    %c0_i32_1 = arith.constant 0 : i32
    return %arg0, %c0_i32, %c0_i32_0 : i32, i32, i32
  }
}

</mosaic_0001>

<llo_original>
// kernel: concat_gn_forward.1
$region0: #{concat_gn_forward.1}
  #allocation0 [shape = 'u32[]', space=smem, size = 0x4, offset = 0x4, fixed_abs, tag = 'smem constant byte address 0x4 - core index']
  #allocation1 [shape = 'u32[144,128]{1,0:T(1,128)}', space=vmem, size = 0x12000, scoped, tag = 'internal scratch']
  #allocation2 [shape = 'bf16[288,288]{1,0:T(16,128)(2,1)}', space=vmem, size = 0x36000, scoped, tag = 'scratch operand']
  %s0 = inlined_call_operand.vmem [shape: bf16[2,32,326], index: 0, kind: input, shape index: {}]
  %s1 = inlined_call_operand.vmem [shape: bf16[32,288], index: 1, kind: input, shape index: {}]
  %s2 = inlined_call_operand.vmem [shape: f32[32,32], index: 2, kind: input, shape index: {}]
  %s3 = inlined_call_operand.vmem [shape: f32[1,288], index: 3, kind: input, shape index: {}]
  %s4 = inlined_call_operand.vmem [shape: f32[32,1], index: 4, kind: input, shape index: {}]
  %s5 = inlined_call_operand.vmem [shape: f32[32,1], index: 5, kind: input, shape index: {}]
  %s6 = inlined_call_operand.vmem [shape: f32[2,32,288], index: 6, kind: output, shape index: {}]
  %s7 = sld [smem:[#allocation0]]
  $region57: #{concat_gn_forward.1} parent=0
    _
  %s9 = ssub.s32 1, %s7
  %s10 = scalar_select 0, %s9, %s7
  loop: start=0, step=1, limit=4
  $region2: #{concat_gn_forward.1} parent=0 // loop_pre_header
    _
  $region3: #{concat_gn_forward.1} parent=0 // loop_header
    %s12 = sphi 0, %s16
    %p13 = scmp.ge.s32.totalorder %s12, 4
    %s22 = sphi 0, %s24
    %s25 = sphi 0, %s22
    %s26 = sphi 0, %s25
    %s42 = sphi 0, %s26
    %s46 = sphi 0, %s46
    %s48 = sphi 0, %s46
    %s49 = sphi 0, %s48
    %s63 = sphi 0, %s49
    %s67 = sphi 0, %s67
    %s69 = sphi 0, %s67
    %s70 = sphi 0, %s69
    %s84 = sphi 0, %s70
    %s88 = sphi 0, %s88
    %s90 = sphi 0, %s88
    %s91 = sphi 0, %s90
    %s105 = sphi 0, %s91
    %s109 = sphi 0, %s109
    %s111 = sphi 0, %s109
    %s112 = sphi 0, %s111
    %s126 = sphi 0, %s112
    %s130 = sphi 0, %s130
    %s132 = sphi 0, %s130
    %s133 = sphi 0, %s132
    %s147 = sphi 0, %s133
    %s153 = sphi 0, %s155
    %s156 = sphi 0, %s153
    %s157 = sphi 0, %s156
    %s173 = sphi 0, %s157
  $region4: #{concat_gn_forward.1} parent=0 // loop_header_branch
    %15 = sbr.rel (%p13) target = $region8
  $region5: #{concat_gn_forward.1} parent=0 // loop_body
    %s17 = ssub.s32 %s12, 1
    %s18 = ssub.s32 %s12, 2
    %s19 = sadd.s32 %s12, 1
    %s20 = ssub.s32 %s12, %s19
    %p21 = scmp.eq.s32.totalorder %s20, 0
    %s23 = sadd.s32 %s22, 1
    %s24 = scalar_select %p21, %s22, %s23
    %p27 = pneg %p21
    %p28 = scmp.eq.s32.totalorder %s12, 1
    %p29 = por %p27, %p28
    %p30 = scmp.ne.s32.totalorder %s22, %s25
    %p31 = scmp.eq.s32.totalorder %s12, 0
    %p32 = por %p30, %p31
    %p33 = scmp.ne.s32.totalorder %s22, %s25
    %p34 = scmp.eq.s32.totalorder %s17, 1
    %p35 = por %p33, %p34
    %p36 = scmp.ne.s32.totalorder %s25, %s26
    %p37 = scmp.eq.s32.totalorder %s17, 0
    %p38 = por %p36, %p37
    %p39 = scmp.ne.s32.totalorder %s25, %s26
    %p40 = scmp.eq.s32.totalorder %s18, 1
    %p41 = por %p39, %p40
    %p43 = scmp.ne.s32.totalorder %s26, %s42
    %p44 = scmp.eq.s32.totalorder %s18, 0
    %p45 = por %p43, %p44
    %s47 = sadd.s32 %s46, 1
    %p50 = scmp.eq.s32.totalorder %s12, 1
    %p51 = scmp.ne.s32.totalorder %s46, %s48
    %p52 = scmp.eq.s32.totalorder %s12, 0
    %p53 = por %p51, %p52
    %p54 = scmp.ne.s32.totalorder %s46, %s48
    %p55 = scmp.eq.s32.totalorder %s17, 1
    %p56 = por %p54, %p55
    %p57 = scmp.ne.s32.totalorder %s48, %s49
    %p58 = scmp.eq.s32.totalorder %s17, 0
    %p59 = por %p57, %p58
    %p60 = scmp.ne.s32.totalorder %s48, %s49
    %p61 = scmp.eq.s32.totalorder %s18, 1
    %p62 = por %p60, %p61
    %p64 = scmp.ne.s32.totalorder %s49, %s63
    %p65 = scmp.eq.s32.totalorder %s18, 0
    %p66 = por %p64, %p65
    %s68 = sadd.s32 %s67, 1
    %p71 = scmp.eq.s32.totalorder %s12, 1
    %p72 = scmp.ne.s32.totalorder %s67, %s69
    %p73 = scmp.eq.s32.totalorder %s12, 0
    %p74 = por %p72, %p73
    %p75 = scmp.ne.s32.totalorder %s67, %s69
    %p76 = scmp.eq.s32.totalorder %s17, 1
    %p77 = por %p75, %p76
    %p78 = scmp.ne.s32.totalorder %s69, %s70
    %p79 = scmp.eq.s32.totalorder %s17, 0
    %p80 = por %p78, %p79
    %p81 = scmp.ne.s32.totalorder %s69, %s70
    %p82 = scmp.eq.s32.totalorder %s18, 1
    %p83 = por %p81, %p82
    %p85 = scmp.ne.s32.totalorder %s70, %s84
    %p86 = scmp.eq.s32.totalorder %s18, 0
    %p87 = por %p85, %p86
    %s89 = sadd.s32 %s88, 1
    %p92 = scmp.eq.s32.totalorder %s12, 1
    %p93 = scmp.ne.s32.totalorder %s88, %s90
    %p94 = scmp.eq.s32.totalorder %s12, 0
    %p95 = por %p93, %p94
    %p96 = scmp.ne.s32.totalorder %s88, %s90
    %p97 = scmp.eq.s32.totalorder %s17, 1
    %p98 = por %p96, %p97
    %p99 = scmp.ne.s32.totalorder %s90, %s91
    %p100 = scmp.eq.s32.totalorder %s17, 0
    %p101 = por %p99, %p100
    %p102 = scmp.ne.s32.totalorder %s90, %s91
    %p103 = scmp.eq.s32.totalorder %s18, 1
    %p104 = por %p102, %p103
    %p106 = scmp.ne.s32.totalorder %s91, %s105
    %p107 = scmp.eq.s32.totalorder %s18, 0
    %p108 = por %p106, %p107
    %s110 = sadd.s32 %s109, 1
    %p113 = scmp.eq.s32.totalorder %s12, 1
    %p114 = scmp.ne.s32.totalorder %s109, %s111
    %p115 = scmp.eq.s32.totalorder %s12, 0
    %p116 = por %p114, %p115
    %p117 = scmp.ne.s32.totalorder %s109, %s111
    %p118 = scmp.eq.s32.totalorder %s17, 1
    %p119 = por %p117, %p118
    %p120 = scmp.ne.s32.totalorder %s111, %s112
    %p121 = scmp.eq.s32.totalorder %s17, 0
    %p122 = por %p120, %p121
    %p123 = scmp.ne.s32.totalorder %s111, %s112
    %p124 = scmp.eq.s32.totalorder %s18, 1
    %p125 = por %p123, %p124
    %p127 = scmp.ne.s32.totalorder %s112, %s126
    %p128 = scmp.eq.s32.totalorder %s18, 0
    %p129 = por %p127, %p128
    %s131 = sadd.s32 %s130, 1
    %p134 = scmp.eq.s32.totalorder %s12, 1
    %p135 = scmp.ne.s32.totalorder %s130, %s132
    %p136 = scmp.eq.s32.totalorder %s12, 0
    %p137 = por %p135, %p136
    %p138 = scmp.ne.s32.totalorder %s130, %s132
    %p139 = scmp.eq.s32.totalorder %s17, 1
    %p140 = por %p138, %p139
    %p141 = scmp.ne.s32.totalorder %s132, %s133
    %p142 = scmp.eq.s32.totalorder %s17, 0
    %p143 = por %p141, %p142
    %p144 = scmp.ne.s32.totalorder %s132, %s133
    %p145 = scmp.eq.s32.totalorder %s18, 1
    %p146 = por %p144, %p145
    %p148 = scmp.ne.s32.totalorder %s133, %s147
    %p149 = scmp.eq.s32.totalorder %s18, 0
    %p150 = por %p148, %p149
    %s151 = ssub.s32 %s12, %s19
    %p152 = scmp.eq.s32.totalorder %s151, 0
    %s154 = sadd.s32 %s153, 1
    %s155 = scalar_select %p152, %s153, %s154
    %p158 = pneg %p152
    %p159 = scmp.eq.s32.totalorder %s12, 1
    %p160 = por %p158, %p159
    %p161 = scmp.ne.s32.totalorder %s153, %s156
    %p162 = scmp.eq.s32.totalorder %s12, 0
    %p163 = por %p161, %p162
    %p164 = scmp.ne.s32.totalorder %s153, %s156
    %p165 = scmp.eq.s32.totalorder %s17, 1
    %p166 = por %p164, %p165
    %p167 = scmp.ne.s32.totalorder %s156, %s157
    %p168 = scmp.eq.s32.totalorder %s17, 0
    %p169 = por %p167, %p168
    %p170 = scmp.ne.s32.totalorder %s156, %s157
    %p171 = scmp.eq.s32.totalorder %s18, 1
    %p172 = por %p170, %p171
    %p174 = scmp.ne.s32.totalorder %s157, %s173
    %p175 = scmp.eq.s32.totalorder %s18, 0
    %p176 = por %p174, %p175
    %p177 = scmp.le.s32.totalorder 1, %s12
    %p178 = scmp.lt.s32.totalorder %s12, 3
    %p179 = pnand %p177, %p178
    %p180 = pneg %p179
    // Predicated region
    $region9: #{concat_gn_forward.1} parent=5 // pred_check
      _
    $region10: #{concat_gn_forward.1} parent=5 // pred_check_branch
      %182 = sbr.rel (%p179) target = $region12
    $region11: #{concat_gn_forward.1} parent=5 // pred_region
      %s183 = ssub.s32 %s12, 1
      // Predicated region
      $region13: #{concat_gn_forward.1} parent=11 // pred_check
        %p184 = pneg %p59
      $region14: #{concat_gn_forward.1} parent=11 // pred_check_branch
        %186 = sbr.rel (%p184) target = $region16
      $region15: #{concat_gn_forward.1} parent=11 // pred_region
        _
      $region16: #{concat_gn_forward.1} parent=11 // pred_fallthru
        _
      // Predicated region
      $region17: #{concat_gn_forward.1} parent=11 // pred_check
        %p187 = pneg %p80
      $region18: #{concat_gn_forward.1} parent=11 // pred_check_branch
        %189 = sbr.rel (%p187) target = $region20
      $region19: #{concat_gn_forward.1} parent=11 // pred_region
        _
      $region20: #{concat_gn_forward.1} parent=11 // pred_fallthru
        _
      // Predicated region
      $region21: #{concat_gn_forward.1} parent=11 // pred_check
        %p190 = pneg %p101
      $region22: #{concat_gn_forward.1} parent=11 // pred_check_branch
        %192 = sbr.rel (%p190) target = $region24
      $region23: #{concat_gn_forward.1} parent=11 // pred_region
        _
      $region24: #{concat_gn_forward.1} parent=11 // pred_fallthru
        _
      // Predicated region
      $region25: #{concat_gn_forward.1} parent=11 // pred_check
        %p193 = pneg %p122
      $region26: #{concat_gn_forward.1} parent=11 // pred_check_branch
        %195 = sbr.rel (%p193) target = $region28
      $region27: #{concat_gn_forward.1} parent=11 // pred_region
        _
      $region28: #{concat_gn_forward.1} parent=11 // pred_fallthru
        _
      // Predicated region
      $region29: #{concat_gn_forward.1} parent=11 // pred_check
        %p196 = pneg %p143
      $region30: #{concat_gn_forward.1} parent=11 // pred_check_branch
        %198 = sbr.rel (%p196) target = $region32
      $region31: #{concat_gn_forward.1} parent=11 // pred_region
        _
      $region32: #{concat_gn_forward.1} parent=11 // pred_fallthru
        _
    $region12: #{concat_gn_forward.1} parent=5 // pred_fallthru
      _
    %p199 = scmp.lt.s32.totalorder %s12, 2
    // Predicated region
    $region33: #{concat_gn_forward.1} parent=5 // pred_check
      %p200 = pneg %p199
    $region34: #{concat_gn_forward.1} parent=5 // pred_check_branch
      %202 = sbr.rel (%p200) target = $region36
    $region35: #{concat_gn_forward.1} parent=5 // pred_region
      // Predicated region
      $region37: #{concat_gn_forward.1} parent=35 // pred_check
        %p203 = pneg %p32
      $region38: #{concat_gn_forward.1} parent=35 // pred_check_branch
        %205 = sbr.rel (%p203) target = $region40
      $region39: #{concat_gn_forward.1} parent=35 // pred_region
        %p206 = scmp.lt.s32.totalorder %s12, 1
        %s207 = scalar_select %p206, %s12, 1
        %s208 = smul.addr %s207, 12
        %s209 = smul.addr %s208, 4
        %s210 = scalar_lea.vmem %s0, %s209
      $region40: #{concat_gn_forward.1} parent=35 // pred_fallthru
        _
    $region36: #{concat_gn_forward.1} parent=5 // pred_fallthru
      _
    %p211 = scmp.le.s32.totalorder 1, %s12
    %p212 = scmp.lt.s32.totalorder %s12, 3
    %p213 = pnand %p211, %p212
    %p214 = pneg %p213
    // Predicated region
    $region41: #{concat_gn_forward.1} parent=5 // pred_check
      _
    $region42: #{concat_gn_forward.1} parent=5 // pred_check_branch
      %216 = sbr.rel (%p213) target = $region44
    $region43: #{concat_gn_forward.1} parent=5 // pred_region
      %s217 = ssub.s32 %s12, 1
      %p218 = scmp.lt.s32.totalorder %s17, 1
      %s219 = scalar_select %p218, %s17, 1
      %s220 = smul.addr %s219, 12
      %s221 = smul.addr %s220, 4
      %s222 = scalar_lea.vmem %s0, %s221
      %p223 = pneg %p38
      %p224 = pneg %p35
      %p225 = pneg %p59
      %p226 = pneg %p56
      %p227 = pneg %p80
      %p228 = pneg %p77
      %p229 = pneg %p101
      %p230 = pneg %p98
      %p231 = pneg %p122
      %p232 = pneg %p119
      %p233 = pneg %p143
      %p234 = pneg %p140
      %p235 = pneg %p169
      %p236 = pneg %p166
      %p237 = scmp.lt.s32.totalorder %s17, 1
      %s238 = scalar_select %p237, %s17, 1
      %s239 = smul.addr %s238, 12
      %s240 = smul.addr %s239, 8
      %s241 = scalar_lea.vmem %s6, %s240
      %p242 = scmp.lt.s32.totalorder %s17, 1
      %s243 = scalar_select %p242, %s17, 1
      %s244 = smul.addr %s243, 12
      %s245 = smul.addr %s244, 4
      %s246 = scalar_lea.vmem %s0, %s245
      %p247 = scmp.lt.s32.totalorder %s17, 1
      %s248 = scalar_select %p247, %s17, 1
      %s249 = smul.addr %s248, 12
      %s250 = smul.addr %s249, 8
      %s251 = scalar_lea.vmem %s6, %s250
      %v253 = vld [vmem:[%s246] sm:$0xff]
      %v254 = vld [vmem:[%s246 + $0x8] sm:$0xf]
      %v255 = vld [vmem:[%s246 + $0xc] sm:$0xff]
      %v256 = vld [vmem:[%s246 + $0x14] sm:$0xf]
      %v257 = vld [vmem:[%s246 + $0x18] sm:$0xff]
      %v258 = vld [vmem:[%s246 + $0x20] sm:$0xf]
      %v259 = vld [vmem:[%s246 + $0x24] sm:$0xff]
      %v260 = vld [vmem:[%s246 + $0x2c] sm:$0xf]
      %v269 = vunpack.c.l.b16 %v253
      %v270 = vunpack.c.h.b16 %v253
      %v271 = vunpack.c.l.b16 %v254
      %v272 = vunpack.c.l.b16 %v255
      %v273 = vunpack.c.h.b16 %v255
      %v274 = vunpack.c.l.b16 %v256
      %v275 = vunpack.c.l.b16 %v257
      %v276 = vunpack.c.h.b16 %v257
      %v277 = vunpack.c.l.b16 %v258
      %v278 = vunpack.c.l.b16 %v259
      %v279 = vunpack.c.h.b16 %v259
      %v280 = vunpack.c.l.b16 %v260
      %v281 = vpack.c.b16 %v272, %v269
      %v282 = vpack.c.b16 %v273, %v270
      %v283 = vpack.c.b16 %v274, %v271
      %v284 = vpack.c.b16 %v278, %v275
      %v285 = vpack.c.b16 %v279, %v276
      %v286 = vpack.c.b16 %v280, %v277
      %293 = vst [vmem:[#allocation2] sm:$0xff] %v281
      %294 = vst [vmem:[#allocation2 + $0x8] sm:$0xff] %v282
      %vm295 = vcmask 261120
      %296 = vst.msk [vmem:[#allocation2 + $0x10] sm:$0xff] %vm295, %v283
      %297 = vst [vmem:[#allocation2 + $0x18] sm:$0xff] %v284
      %298 = vst [vmem:[#allocation2 + $0x20] sm:$0xff] %v285
      %299 = vst.msk [vmem:[#allocation2 + $0x28] sm:$0xff] %vm295, %v286
      %v300 = vld [vmem:[%s246] sm:$0xff]
      %v301 = vld [vmem:[%s246 + $0x8] sm:$0xf]
      %v302 = vld [vmem:[%s246 + $0xc] sm:$0xff]
      %v303 = vld [vmem:[%s246 + $0x14] sm:$0xf]
      %v304 = vld [vmem:[%s246 + $0x18] sm:$0xff]
      %v305 = vld [vmem:[%s246 + $0x20] sm:$0xf]
      %v306 = vld [vmem:[%s246 + $0x24] sm:$0xff]
      %v307 = vld [vmem:[%s246 + $0x2c] sm:$0xf]
      %v316 = vunpack.c.l.b16 %v300
      %v317 = vunpack.c.h.b16 %v300
      %v318 = vunpack.c.l.b16 %v301
      %v319 = vunpack.c.l.b16 %v302
      %v320 = vunpack.c.h.b16 %v302
      %v321 = vunpack.c.l.b16 %v303
      %v322 = vunpack.c.l.b16 %v304
      %v323 = vunpack.c.h.b16 %v304
      %v324 = vunpack.c.l.b16 %v305
      %v325 = vunpack.c.l.b16 %v306
      %v326 = vunpack.c.h.b16 %v306
      %v327 = vunpack.c.l.b16 %v307
      %v328 = vpack.c.b16 %v319, %v316
      %v329 = vpack.c.b16 %v320, %v317
      %v330 = vpack.c.b16 %v321, %v318
      %v331 = vpack.c.b16 %v325, %v322
      %v332 = vpack.c.b16 %v326, %v323
      %v333 = vpack.c.b16 %v327, %v324
      %334 = vrot.lane.b32.xlu0 %v328, 127
      %v335 = vpop.permute.xlu0 %334
      %336 = vrot.lane.b32.xlu0 %v329, 127
      %v337 = vpop.permute.xlu0 %336
      %338 = vrot.lane.b32.xlu0 %v330, 127
      %v339 = vpop.permute.xlu0 %338
      %340 = vrot.lane.b32.xlu0 %v331, 127
      %v341 = vpop.permute.xlu0 %340
      %342 = vrot.lane.b32.xlu0 %v332, 127
      %v343 = vpop.permute.xlu0 %342
      %344 = vrot.lane.b32.xlu0 %v333, 127
      %v345 = vpop.permute.xlu0 %344
      %vm346 = vcmask 1039360
      %v347 = vsel %vm346, %v335, %v337
      %v348 = vsel %vm346, %v337, %v339
      %v349 = vsel %vm346, %v341, %v343
      %v350 = vsel %vm346, %v343, %v345
      %357 = vst [vmem:[#allocation2 + $0x30] sm:$0xff] %v347
      %358 = vst [vmem:[#allocation2 + $0x38] sm:$0xff] %v348
      %359 = vst.msk [vmem:[#allocation2 + $0x40] sm:$0xff] %vm295, %v339
      %360 = vst [vmem:[#allocation2 + $0x48] sm:$0xff] %v349
      %361 = vst [vmem:[#allocation2 + $0x50] sm:$0xff] %v350
      %362 = vst.msk [vmem:[#allocation2 + $0x58] sm:$0xff] %vm295, %v345
      %v363 = vld [vmem:[%s246] sm:$0xff]
      %v364 = vld [vmem:[%s246 + $0x8] sm:$0xf]
      %v365 = vld [vmem:[%s246 + $0xc] sm:$0xff]
      %v366 = vld [vmem:[%s246 + $0x14] sm:$0xf]
      %v367 = vld [vmem:[%s246 + $0x18] sm:$0xff]
      %v368 = vld [vmem:[%s246 + $0x20] sm:$0xf]
      %v369 = vld [vmem:[%s246 + $0x24] sm:$0xff]
      %v370 = vld [vmem:[%s246 + $0x2c] sm:$0xf]
      %v379 = vunpack.c.l.b16 %v363
      %v380 = vunpack.c.h.b16 %v363
      %v381 = vunpack.c.l.b16 %v364
      %v382 = vunpack.c.l.b16 %v365
      %v383 = vunpack.c.h.b16 %v365
      %v384 = vunpack.c.l.b16 %v366
      %v385 = vunpack.c.l.b16 %v367
      %v386 = vunpack.c.h.b16 %v367
      %v387 = vunpack.c.l.b16 %v368
      %v388 = vunpack.c.l.b16 %v369
      %v389 = vunpack.c.h.b16 %v369
      %v390 = vunpack.c.l.b16 %v370
      %v391 = vpack.c.b16 %v382, %v379
      %v392 = vpack.c.b16 %v383, %v380
      %v393 = vpack.c.b16 %v384, %v381
      %v394 = vpack.c.b16 %v388, %v385
      %v395 = vpack.c.b16 %v389, %v386
      %v396 = vpack.c.b16 %v390, %v387
      %397 = vrot.lane.b32.xlu0 %v391, 126
      %v398 = vpop.permute.xlu0 %397
      %399 = vrot.lane.b32.xlu0 %v392, 126
      %v400 = vpop.permute.xlu0 %399
      %401 = vrot.lane.b32.xlu0 %v393, 126
      %v402 = vpop.permute.xlu0 %401
      %403 = vrot.lane.b32.xlu0 %v394, 126
      %v404 = vpop.permute.xlu0 %403
      %405 = vrot.lane.b32.xlu0 %v395, 126
      %v406 = vpop.permute.xlu0 %405
      %407 = vrot.lane.b32.xlu0 %v396, 126
      %v408 = vpop.permute.xlu0 %407
      %vm409 = vcmask 1031168
      %v410 = vsel %vm409, %v398, %v400
      %v411 = vsel %vm409, %v400, %v402
      %v412 = vsel %vm409, %v404, %v406
      %v413 = vsel %vm409, %v406, %v408
      %420 = vst [vmem:[#allocation2 + $0x60] sm:$0xff] %v410
      %421 = vst [vmem:[#allocation2 + $0x68] sm:$0xff] %v411
      %422 = vst.msk [vmem:[#allocation2 + $0x70] sm:$0xff] %vm295, %v402
      %423 = vst [vmem:[#allocation2 + $0x78] sm:$0xff] %v412
      %424 = vst [vmem:[#allocation2 + $0x80] sm:$0xff] %v413
      %425 = vst.msk [vmem:[#allocation2 + $0x88] sm:$0xff] %vm295, %v408
      %v426 = vld [vmem:[%s246] sm:$0xff]
      %v427 = vld [vmem:[%s246 + $0x8] sm:$0xf]
      %v428 = vld [vmem:[%s246 + $0xc] sm:$0xff]
      %v429 = vld [vmem:[%s246 + $0x14] sm:$0xf]
      %v430 = vld [vmem:[%s246 + $0x18] sm:$0xff]
      %v431 = vld [vmem:[%s246 + $0x20] sm:$0xf]
      %v432 = vld [vmem:[%s246 + $0x24] sm:$0xff]
      %v433 = vld [vmem:[%s246 + $0x2c] sm:$0xf]
      %v442 = vunpack.c.l.b16 %v426
      %v443 = vunpack.c.h.b16 %v426
      %v444 = vunpack.c.l.b16 %v427
      %v445 = vunpack.c.l.b16 %v428
      %v446 = vunpack.c.h.b16 %v428
      %v447 = vunpack.c.l.b16 %v429
      %v448 = vunpack.c.l.b16 %v430
      %v449 = vunpack.c.h.b16 %v430
      %v450 = vunpack.c.l.b16 %v431
      %v451 = vunpack.c.l.b16 %v432
      %v452 = vunpack.c.h.b16 %v432
      %v453 = vunpack.c.l.b16 %v433
      %v454 = vpack.c.b16 %v445, %v442
      %v455 = vpack.c.b16 %v446, %v443
      %v456 = vpack.c.b16 %v447, %v444
      %v457 = vpack.c.b16 %v451, %v448
      %v458 = vpack.c.b16 %v452, %v449
      %v459 = vpack.c.b16 %v453, %v450
      %460 = vrot.lane.b32.xlu0 %v454, 110
      %v461 = vpop.permute.xlu0 %460
      %462 = vrot.lane.b32.xlu0 %v455, 110
      %v463 = vpop.permute.xlu0 %462
      %464 = vrot.lane.b32.xlu0 %v456, 110
      %v465 = vpop.permute.xlu0 %464
      %466 = vrot.lane.b32.xlu0 %v457, 110
      %v467 = vpop.permute.xlu0 %466
      %468 = vrot.lane.b32.xlu0 %v458, 110
      %v469 = vpop.permute.xlu0 %468
      %470 = vrot.lane.b32.xlu0 %v459, 110
      %v471 = vpop.permute.xlu0 %470
      %vm472 = vcmask 900096
      %v473 = vsel %vm472, %v461, %v463
      %v474 = vsel %vm472, %v463, %v465
      %v475 = vsel %vm472, %v467, %v469
      %v476 = vsel %vm472, %v469, %v471
      %483 = vst [vmem:[#allocation2 + $0x90] sm:$0xff] %v473
      %484 = vst [vmem:[#allocation2 + $0x98] sm:$0xff] %v474
      %485 = vst.msk [vmem:[#allocation2 + $0xa0] sm:$0xff] %vm295, %v465
      %486 = vst [vmem:[#allocation2 + $0xa8] sm:$0xff] %v475
      %487 = vst [vmem:[#allocation2 + $0xb0] sm:$0xff] %v476
      %488 = vst.msk [vmem:[#allocation2 + $0xb8] sm:$0xff] %vm295, %v471
      %v489 = vld [vmem:[%s246] sm:$0xff]
      %v490 = vld [vmem:[%s246 + $0x8] sm:$0xf]
      %v491 = vld [vmem:[%s246 + $0xc] sm:$0xff]
      %v492 = vld [vmem:[%s246 + $0x14] sm:$0xf]
      %v493 = vld [vmem:[%s246 + $0x18] sm:$0xff]
      %v494 = vld [vmem:[%s246 + $0x20] sm:$0xf]
      %v495 = vld [vmem:[%s246 + $0x24] sm:$0xff]
      %v496 = vld [vmem:[%s246 + $0x2c] sm:$0xf]
      %v505 = vunpack.c.l.b16 %v489
      %v506 = vunpack.c.h.b16 %v489
      %v507 = vunpack.c.l.b16 %v490
      %v508 = vunpack.c.l.b16 %v491
      %v509 = vunpack.c.h.b16 %v491
      %v510 = vunpack.c.l.b16 %v492
      %v511 = vunpack.c.l.b16 %v493
      %v512 = vunpack.c.h.b16 %v493
      %v513 = vunpack.c.l.b16 %v494
      %v514 = vunpack.c.l.b16 %v495
      %v515 = vunpack.c.h.b16 %v495
      %v516 = vunpack.c.l.b16 %v496
      %v517 = vpack.c.b16 %v508, %v505
      %v518 = vpack.c.b16 %v509, %v506
      %v519 = vpack.c.b16 %v510, %v507
      %v520 = vpack.c.b16 %v514, %v511
      %v521 = vpack.c.b16 %v515, %v512
      %v522 = vpack.c.b16 %v516, %v513
      %523 = vrot.lane.b32.xlu0 %v517, 109
      %v524 = vpop.permute.xlu0 %523
      %525 = vrot.lane.b32.xlu0 %v518, 109
      %v526 = vpop.permute.xlu0 %525
      %527 = vrot.lane.b32.xlu0 %v519, 109
      %v528 = vpop.permute.xlu0 %527
      %529 = vrot.lane.b32.xlu0 %v520, 109
      %v530 = vpop.permute.xlu0 %529
      %531 = vrot.lane.b32.xlu0 %v521, 109
      %v532 = vpop.permute.xlu0 %531
      %533 = vrot.lane.b32.xlu0 %v522, 109
      %v534 = vpop.permute.xlu0 %533
      %vm535 = vcmask 891904
      %v536 = vsel %vm535, %v524, %v526
      %v537 = vsel %vm535, %v526, %v528
      %v538 = vsel %vm535, %v530, %v532
      %v539 = vsel %vm535, %v532, %v534
      %546 = vst [vmem:[#allocation2 + $0xc0] sm:$0xff] %v536
      %547 = vst [vmem:[#allocation2 + $0xc8] sm:$0xff] %v537
      %548 = vst.msk [vmem:[#allocation2 + $0xd0] sm:$0xff] %vm295, %v528
      %549 = vst [vmem:[#allocation2 + $0xd8] sm:$0xff] %v538
      %550 = vst [vmem:[#allocation2 + $0xe0] sm:$0xff] %v539
      %551 = vst.msk [vmem:[#allocation2 + $0xe8] sm:$0xff] %vm295, %v534
      %v552 = vld [vmem:[%s246] sm:$0xff]
      %v553 = vld [vmem:[%s246 + $0x8] sm:$0xf]
      %v554 = vld [vmem:[%s246 + $0xc] sm:$0xff]
      %v555 = vld [vmem:[%s246 + $0x14] sm:$0xf]
      %v556 = vld [vmem:[%s246 + $0x18] sm:$0xff]
      %v557 = vld [vmem:[%s246 + $0x20] sm:$0xf]
      %v558 = vld [vmem:[%s246 + $0x24] sm:$0xff]
      %v559 = vld [vmem:[%s246 + $0x2c] sm:$0xf]
      %v568 = vunpack.c.l.b16 %v552
      %v569 = vunpack.c.h.b16 %v552
      %v570 = vunpack.c.l.b16 %v553
      %v571 = vunpack.c.l.b16 %v554
      %v572 = vunpack.c.h.b16 %v554
      %v573 = vunpack.c.l.b16 %v555
      %v574 = vunpack.c.l.b16 %v556
      %v575 = vunpack.c.h.b16 %v556
      %v576 = vunpack.c.l.b16 %v557
      %v577 = vunpack.c.l.b16 %v558
      %v578 = vunpack.c.h.b16 %v558
      %v579 = vunpack.c.l.b16 %v559
      %v580 = vpack.c.b16 %v571, %v568
      %v581 = vpack.c.b16 %v572, %v569
      %v582 = vpack.c.b16 %v573, %v570
      %v583 = vpack.c.b16 %v577, %v574
      %v584 = vpack.c.b16 %v578, %v575
      %v585 = vpack.c.b16 %v579, %v576
      %586 = vrot.lane.b32.xlu0 %v580, 108
      %v587 = vpop.permute.xlu0 %586
      %588 = vrot.lane.b32.xlu0 %v581, 108
      %v589 = vpop.permute.xlu0 %588
      %590 = vrot.lane.b32.xlu0 %v582, 108
      %v591 = vpop.permute.xlu0 %590
      %592 = vrot.lane.b32.xlu0 %v583, 108
      %v593 = vpop.permute.xlu0 %592
      %594 = vrot.lane.b32.xlu0 %v584, 108
      %v595 = vpop.permute.xlu0 %594
      %596 = vrot.lane.b32.xlu0 %v585, 108
      %v597 = vpop.permute.xlu0 %596
      %vm598 = vcmask 883712
      %v599 = vsel %vm598, %v587, %v589
      %v600 = vsel %vm598, %v589, %v591
      %v601 = vsel %vm598, %v593, %v595
      %v602 = vsel %vm598, %v595, %v597
      %609 = vst [vmem:[#allocation2 + $0xf0] sm:$0xff] %v599
      %610 = vst [vmem:[#allocation2 + $0xf8] sm:$0xff] %v600
      %611 = vst.msk [vmem:[#allocation2 + $0x100] sm:$0xff] %vm295, %v591
      %612 = vst [vmem:[#allocation2 + $0x108] sm:$0xff] %v601
      %613 = vst [vmem:[#allocation2 + $0x110] sm:$0xff] %v602
      %614 = vst.msk [vmem:[#allocation2 + $0x118] sm:$0xff] %vm295, %v597
      %v615 = vld [vmem:[%s246] sm:$0xff]
      %v616 = vld [vmem:[%s246 + $0x8] sm:$0xf]
      %v617 = vld [vmem:[%s246 + $0xc] sm:$0xff]
      %v618 = vld [vmem:[%s246 + $0x14] sm:$0xf]
      %v619 = vld [vmem:[%s246 + $0x18] sm:$0xff]
      %v620 = vld [vmem:[%s246 + $0x20] sm:$0xf]
      %v621 = vld [vmem:[%s246 + $0x24] sm:$0xff]
      %v622 = vld [vmem:[%s246 + $0x2c] sm:$0xf]
      %v631 = vunpack.c.l.b16 %v615
      %v632 = vunpack.c.h.b16 %v615
      %v633 = vunpack.c.l.b16 %v616
      %v634 = vunpack.c.l.b16 %v617
      %v635 = vunpack.c.h.b16 %v617
      %v636 = vunpack.c.l.b16 %v618
      %v637 = vunpack.c.l.b16 %v619
      %v638 = vunpack.c.h.b16 %v619
      %v639 = vunpack.c.l.b16 %v620
      %v640 = vunpack.c.l.b16 %v621
      %v641 = vunpack.c.h.b16 %v621
      %v642 = vunpack.c.l.b16 %v622
      %v643 = vpack.c.b16 %v634, %v631
      %v644 = vpack.c.b16 %v635, %v632
      %v645 = vpack.c.b16 %v636, %v633
      %v646 = vpack.c.b16 %v640, %v637
      %v647 = vpack.c.b16 %v641, %v638
      %v648 = vpack.c.b16 %v642, %v639
      %649 = vrot.lane.b32.xlu0 %v643, 92
      %v650 = vpop.permute.xlu0 %649
      %651 = vrot.lane.b32.xlu0 %v644, 92
      %v652 = vpop.permute.xlu0 %651
      %653 = vrot.lane.b32.xlu0 %v645, 92
      %v654 = vpop.permute.xlu0 %653
      %655 = vrot.lane.b32.xlu0 %v646, 92
      %v656 = vpop.permute.xlu0 %655
      %657 = vrot.lane.b32.xlu0 %v647, 92
      %v658 = vpop.permute.xlu0 %657
      %659 = vrot.lane.b32.xlu0 %v648, 92
      %v660 = vpop.permute.xlu0 %659
      %vm661 = vcmask 752640
      %v662 = vsel %vm661, %v650, %v652
      %v663 = vsel %vm661, %v652, %v654
      %v664 = vsel %vm661, %v656, %v658
      %v665 = vsel %vm661, %v658, %v660
      %672 = vst [vmem:[#allocation2 + $0x120] sm:$0xff] %v662
      %673 = vst [vmem:[#allocation2 + $0x128] sm:$0xff] %v663
      %674 = vst.msk [vmem:[#allocation2 + $0x130] sm:$0xff] %vm295, %v654
      %675 = vst [vmem:[#allocation2 + $0x138] sm:$0xff] %v664
      %676 = vst [vmem:[#allocation2 + $0x140] sm:$0xff] %v665
      %677 = vst.msk [vmem:[#allocation2 + $0x148] sm:$0xff] %vm295, %v660
      %v678 = vld [vmem:[%s246] sm:$0xff]
      %v679 = vld [vmem:[%s246 + $0x8] sm:$0xf]
      %v680 = vld [vmem:[%s246 + $0xc] sm:$0xff]
      %v681 = vld [vmem:[%s246 + $0x14] sm:$0xf]
      %v682 = vld [vmem:[%s246 + $0x18] sm:$0xff]
      %v683 = vld [vmem:[%s246 + $0x20] sm:$0xf]
      %v684 = vld [vmem:[%s246 + $0x24] sm:$0xff]
      %v685 = vld [vmem:[%s246 + $0x2c] sm:$0xf]
      %v694 = vunpack.c.l.b16 %v678
      %v695 = vunpack.c.h.b16 %v678
      %v696 = vunpack.c.l.b16 %v679
      %v697 = vunpack.c.l.b16 %v680
      %v698 = vunpack.c.h.b16 %v680
      %v699 = vunpack.c.l.b16 %v681
      %v700 = vunpack.c.l.b16 %v682
      %v701 = vunpack.c.h.b16 %v682
      %v702 = vunpack.c.l.b16 %v683
      %v703 = vunpack.c.l.b16 %v684
      %v704 = vunpack.c.h.b16 %v684
      %v705 = vunpack.c.l.b16 %v685
      %v706 = vpack.c.b16 %v697, %v694
      %v707 = vpack.c.b16 %v698, %v695
      %v708 = vpack.c.b16 %v699, %v696
      %v709 = vpack.c.b16 %v703, %v700
      %v710 = vpack.c.b16 %v704, %v701
      %v711 = vpack.c.b16 %v705, %v702
      %712 = vrot.lane.b32.xlu0 %v706, 91
      %v713 = vpop.permute.xlu0 %712
      %714 = vrot.lane.b32.xlu0 %v707, 91
      %v715 = vpop.permute.xlu0 %714
      %716 = vrot.lane.b32.xlu0 %v708, 91
      %v717 = vpop.permute.xlu0 %716
      %718 = vrot.lane.b32.xlu0 %v709, 91
      %v719 = vpop.permute.xlu0 %718
      %720 = vrot.lane.b32.xlu0 %v710, 91
      %v721 = vpop.permute.xlu0 %720
      %722 = vrot.lane.b32.xlu0 %v711, 91
      %v723 = vpop.permute.xlu0 %722
      %vm724 = vcmask 744448
      %v725 = vsel %vm724, %v713, %v715
      %v726 = vsel %vm724, %v715, %v717
      %v727 = vsel %vm724, %v719, %v721
      %v728 = vsel %vm724, %v721, %v723
      %735 = vst [vmem:[#allocation2 + $0x150] sm:$0xff] %v725
      %736 = vst [vmem:[#allocation2 + $0x158] sm:$0xff] %v726
      %737 = vst.msk [vmem:[#allocation2 + $0x160] sm:$0xff] %vm295, %v717
      %738 = vst [vmem:[#allocation2 + $0x168] sm:$0xff] %v727
      %739 = vst [vmem:[#allocation2 + $0x170] sm:$0xff] %v728
      %740 = vst.msk [vmem:[#allocation2 + $0x178] sm:$0xff] %vm295, %v723
      %v741 = vld [vmem:[%s246] sm:$0xff]
      %v742 = vld [vmem:[%s246 + $0x8] sm:$0xf]
      %v743 = vld [vmem:[%s246 + $0xc] sm:$0xff]
      %v744 = vld [vmem:[%s246 + $0x14] sm:$0xf]
      %v745 = vld [vmem:[%s246 + $0x18] sm:$0xff]
      %v746 = vld [vmem:[%s246 + $0x20] sm:$0xf]
      %v747 = vld [vmem:[%s246 + $0x24] sm:$0xff]
      %v748 = vld [vmem:[%s246 + $0x2c] sm:$0xf]
      %v757 = vunpack.c.l.b16 %v741
      %v758 = vunpack.c.h.b16 %v741
      %v759 = vunpack.c.l.b16 %v742
      %v760 = vunpack.c.l.b16 %v743
      %v761 = vunpack.c.h.b16 %v743
      %v762 = vunpack.c.l.b16 %v744
      %v763 = vunpack.c.l.b16 %v745
      %v764 = vunpack.c.h.b16 %v745
      %v765 = vunpack.c.l.b16 %v746
      %v766 = vunpack.c.l.b16 %v747
      %v767 = vunpack.c.h.b16 %v747
      %v768 = vunpack.c.l.b16 %v748
      %v769 = vpack.c.b16 %v760, %v757
      %v770 = vpack.c.b16 %v761, %v758
      %v771 = vpack.c.b16 %v762, %v759
      %v772 = vpack.c.b16 %v766, %v763
      %v773 = vpack.c.b16 %v767, %v764
      %v774 = vpack.c.b16 %v768, %v765
      %775 = vrot.lane.b32.xlu0 %v769, 90
      %v776 = vpop.permute.xlu0 %775
      %777 = vrot.lane.b32.xlu0 %v770, 90
      %v778 = vpop.permute.xlu0 %777
      %779 = vrot.lane.b32.xlu0 %v771, 90
      %v780 = vpop.permute.xlu0 %779
      %781 = vrot.lane.b32.xlu0 %v772, 90
      %v782 = vpop.permute.xlu0 %781
      %783 = vrot.lane.b32.xlu0 %v773, 90
      %v784 = vpop.permute.xlu0 %783
      %785 = vrot.lane.b32.xlu0 %v774, 90
      %v786 = vpop.permute.xlu0 %785
      %vm787 = vcmask 736256
      %v788 = vsel %vm787, %v776, %v778
      %v789 = vsel %vm787, %v778, %v780
      %v790 = vsel %vm787, %v782, %v784
      %v791 = vsel %vm787, %v784, %v786
      %798 = vst [vmem:[#allocation2 + $0x180] sm:$0xff] %v788
      %799 = vst [vmem:[#allocation2 + $0x188] sm:$0xff] %v789
      %800 = vst.msk [vmem:[#allocation2 + $0x190] sm:$0xff] %vm295, %v780
      %801 = vst [vmem:[#allocation2 + $0x198] sm:$0xff] %v790
      %802 = vst [vmem:[#allocation2 + $0x1a0] sm:$0xff] %v791
      %803 = vst.msk [vmem:[#allocation2 + $0x1a8] sm:$0xff] %vm295, %v786
      %v804 = vld [vmem:[%s1] sm:$0xff]
      %v805 = vld [vmem:[%s1 + $0x8] sm:$0xf]
      %v806 = vld [vmem:[%s1 + $0xc] sm:$0xff]
      %v807 = vld [vmem:[%s1 + $0x14] sm:$0xf]
      %v808 = vld [vmem:[%s1 + $0x18] sm:$0xff]
      %v809 = vld [vmem:[%s1 + $0x20] sm:$0xf]
      %v810 = vld [vmem:[%s1 + $0x24] sm:$0xff]
      %v811 = vld [vmem:[%s1 + $0x2c] sm:$0xf]
      %v812 = vld [vmem:[#allocation2] sm:$0xff]
      %v813 = vld [vmem:[#allocation2 + $0x8] sm:$0xff]
      %v814 = vld [vmem:[#allocation2 + $0x10] sm:$0xff]
      %v815 = vld [vmem:[#allocation2 + $0x18] sm:$0xff]
      %v816 = vld [vmem:[#allocation2 + $0x20] sm:$0xff]
      %v817 = vld [vmem:[#allocation2 + $0x28] sm:$0xff]
      %v818 = vld [vmem:[#allocation2 + $0x30] sm:$0xff]
      %v819 = vld [vmem:[#allocation2 + $0x38] sm:$0xff]
      %v820 = vld [vmem:[#allocation2 + $0x40] sm:$0xff]
      %v821 = vld [vmem:[#allocation2 + $0x48] sm:$0xff]
      %v822 = vld [vmem:[#allocation2 + $0x50] sm:$0xff]
      %v823 = vld [vmem:[#allocation2 + $0x58] sm:$0xff]
      %v824 = vld [vmem:[#allocation2 + $0x60] sm:$0xff]
      %v825 = vld [vmem:[#allocation2 + $0x68] sm:$0xff]
      %v826 = vld [vmem:[#allocation2 + $0x70] sm:$0xff]
      %v827 = vld [vmem:[#allocation2 + $0x78] sm:$0xff]
      %v828 = vld [vmem:[#allocation2 + $0x80] sm:$0xff]
      %v829 = vld [vmem:[#allocation2 + $0x88] sm:$0xff]
      %v830 = vld [vmem:[#allocation2 + $0x90] sm:$0xff]
      %v831 = vld [vmem:[#allocation2 + $0x98] sm:$0xff]
      %v832 = vld [vmem:[#allocation2 + $0xa0] sm:$0xff]
      %v833 = vld [vmem:[#allocation2 + $0xa8] sm:$0xff]
      %v834 = vld [vmem:[#allocation2 + $0xb0] sm:$0xff]
      %v835 = vld [vmem:[#allocation2 + $0xb8] sm:$0xff]
      %v836 = vld [vmem:[#allocation2 + $0xc0] sm:$0xff]
      %v837 = vld [vmem:[#allocation2 + $0xc8] sm:$0xff]
      %v838 = vld [vmem:[#allocation2 + $0xd0] sm:$0xff]
      %v839 = vld [vmem:[#allocation2 + $0xd8] sm:$0xff]
      %v840 = vld [vmem:[#allocation2 + $0xe0] sm:$0xff]
      %v841 = vld [vmem:[#allocation2 + $0xe8] sm:$0xff]
      %v842 = vld [vmem:[#allocation2 + $0xf0] sm:$0xff]
      %v843 = vld [vmem:[#allocation2 + $0xf8] sm:$0xff]
      %v844 = vld [vmem:[#allocation2 + $0x100] sm:$0xff]
      %v845 = vld [vmem:[#allocation2 + $0x108] sm:$0xff]
      %v846 = vld [vmem:[#allocation2 + $0x110] sm:$0xff]
      %v847 = vld [vmem:[#allocation2 + $0x118] sm:$0xff]
      %v848 = vld [vmem:[#allocation2 + $0x120] sm:$0xff]
      %v849 = vld [vmem:[#allocation2 + $0x128] sm:$0xff]
      %v850 = vld [vmem:[#allocation2 + $0x130] sm:$0xff]
      %v851 = vld [vmem:[#allocation2 + $0x138] sm:$0xff]
      %v852 = vld [vmem:[#allocation2 + $0x140] sm:$0xff]
      %v853 = vld [vmem:[#allocation2 + $0x148] sm:$0xff]
      %v854 = vld [vmem:[#allocation2 + $0x150] sm:$0xff]
      %v855 = vld [vmem:[#allocation2 + $0x158] sm:$0xff]
      %v856 = vld [vmem:[#allocation2 + $0x160] sm:$0xff]
      %v857 = vld [vmem:[#allocation2 + $0x168] sm:$0xff]
      %v858 = vld [vmem:[#allocation2 + $0x170] sm:$0xff]
      %v859 = vld [vmem:[#allocation2 + $0x178] sm:$0xff]
      %v860 = vld [vmem:[#allocation2 + $0x180] sm:$0xff]
      %v861 = vld [vmem:[#allocation2 + $0x188] sm:$0xff]
      %v862 = vld [vmem:[#allocation2 + $0x190] sm:$0xff]
      %v863 = vld [vmem:[#allocation2 + $0x198] sm:$0xff]
      %v864 = vld [vmem:[#allocation2 + $0x1a0] sm:$0xff]
      %v865 = vld [vmem:[#allocation2 + $0x1a8] sm:$0xff]
      %v874 = vunpack.c.l.b16 %v804
      %v875 = vunpack.c.h.b16 %v804
      %v876 = vunpack.c.l.b16 %v805
      %v877 = vunpack.c.l.b16 %v806
      %v878 = vunpack.c.h.b16 %v806
      %v879 = vunpack.c.l.b16 %v807
      %v880 = vunpack.c.l.b16 %v808
      %v881 = vunpack.c.h.b16 %v808
      %v882 = vunpack.c.l.b16 %v809
      %v883 = vunpack.c.l.b16 %v810
      %v884 = vunpack.c.h.b16 %v810
      %v885 = vunpack.c.l.b16 %v811
      %v886 = vpack.c.b16 %v877, %v874
      %v887 = vpack.c.b16 %v878, %v875
      %v888 = vpack.c.b16 %v879, %v876
      %v889 = vpack.c.b16 %v883, %v880
      %v890 = vpack.c.b16 %v884, %v881
      %v891 = vpack.c.b16 %v885, %v882
      %v897 = vsel %vm295, %v888, 0
      %v900 = vsel %vm295, %v891, 0
      %902 = vmatprep.subr.bf16.mxu0 %v813
      %903 = vmatpush1.bf16.msra.mxu0 %v812
      %904 = vmatprep.subr.bf16.mxu0 %v816
      %905 = vmatpush1.bf16.msra.mxu0 %v815
      %906 = vmatprep.subr.bf16.mxu0 %v819
      %907 = vmatpush1.bf16.msra.mxu0 %v818
      %908 = vmatprep.subr.bf16.mxu0 %v822
      %909 = vmatpush1.bf16.msra.mxu0 %v821
      %910 = vmatprep.subr.bf16.mxu0 %v825
      %911 = vmatpush1.bf16.msra.mxu0 %v824
      %912 = vmatprep.subr.bf16.mxu0 %v828
      %913 = vmatpush1.bf16.msra.mxu0 %v827
      %914 = vmatprep.subr.bf16.mxu0 %v831
      %915 = vmatpush1.bf16.msra.mxu0 %v830
      %916 = vmatprep.subr.bf16.mxu0 %v834
      %917 = vmatpush1.bf16.msra.mxu0 %v833
      %918 = vmatprep.subr.bf16.mxu0 %v837
      %919 = vmatpush1.bf16.msra.mxu0 %v836
      %920 = vmatprep.subr.bf16.mxu0 %v840
      %921 = vmatpush1.bf16.msra.mxu0 %v839
      %922 = vmatprep.subr.bf16.mxu0 %v843
      %923 = vmatpush1.bf16.msra.mxu0 %v842
      %924 = vmatprep.subr.bf16.mxu0 %v846
      %925 = vmatpush1.bf16.msra.mxu0 %v845
      %926 = vmatprep.subr.bf16.mxu0 %v849
      %927 = vmatpush1.bf16.msra.mxu0 %v848
      %928 = vmatprep.subr.bf16.mxu0 %v852
      %929 = vmatpush1.bf16.msra.mxu0 %v851
      %930 = vmatprep.subr.bf16.mxu0 %v855
      %931 = vmatpush1.bf16.msra.mxu0 %v854
      %932 = vmatprep.subr.bf16.mxu0 %v858
      %933 = vmatpush1.bf16.msra.mxu0 %v857
      %934 = vmatprep.mubr.bf16.mxu0 %v887
      %935 = vmatmul.mubr.bf16.gmra.mrb[0].mxu0 %v886
      %v936 = vpop.f32.mrb[0].mxu0
      %v937 = vadd.f32 0.0, %v936
      %v938 = vpop.f32.mrb[0].mxu0
      %v939 = vadd.f32 0.0, %v938
      %v940 = vpop.f32.mrb[0].mxu0
      %v941 = vadd.f32 0.0, %v940
      %v942 = vpop.f32.mrb[0].mxu0
      %v943 = vadd.f32 0.0, %v942
      %944 = vmatprep.mubr.bf16.mxu0 %v890
      %945 = vmatmul.mubr.bf16.gmra.mrb[0].mxu0 %v889
      %v946 = vpop.f32.mrb[0].mxu0
      %v947 = vadd.f32 0.0, %v946
      %v948 = vpop.f32.mrb[0].mxu0
      %v949 = vadd.f32 0.0, %v948
      %v950 = vpop.f32.mrb[0].mxu0
      %v951 = vadd.f32 0.0, %v950
      %v952 = vpop.f32.mrb[0].mxu0
      %v953 = vadd.f32 0.0, %v952
      %954 = vdwg.mxu0
      %955 = vmatprep.subr.bf16.mxu0 %v861
      %956 = vmatpush1.bf16.msra.mxu0 %v860
      %957 = vmatprep.subr.bf16.mxu0 %v864
      %958 = vmatpush1.bf16.msra.mxu0 %v863
      %959 = vmatprep.subr.bf16.mxu0 0
      %960 = vmatpush1.bf16.msra.mxu0 0
      %961 = vmatprep.subr.bf16.mxu0 0
      %962 = vmatpush1.bf16.msra.mxu0 0
      %963 = vmatprep.subr.bf16.mxu0 0
      %964 = vmatpush1.bf16.msra.mxu0 0
      %965 = vmatprep.subr.bf16.mxu0 0
      %966 = vmatpush1.bf16.msra.mxu0 0
      %967 = vmatprep.subr.bf16.mxu0 0
      %968 = vmatpush1.bf16.msra.mxu0 0
      %969 = vmatprep.subr.bf16.mxu0 0
      %970 = vmatpush1.bf16.msra.mxu0 0
      %971 = vmatprep.subr.bf16.mxu0 0
      %972 = vmatpush1.bf16.msra.mxu0 0
      %973 = vmatprep.subr.bf16.mxu0 0
      %974 = vmatpush1.bf16.msra.mxu0 0
      %975 = vmatprep.subr.bf16.mxu0 0
      %976 = vmatpush1.bf16.msra.mxu0 0
      %977 = vmatprep.subr.bf16.mxu0 0
      %978 = vmatpush1.bf16.msra.mxu0 0
      %979 = vmatprep.subr.bf16.mxu0 0
      %980 = vmatpush1.bf16.msra.mxu0 0
      %981 = vmatprep.subr.bf16.mxu0 0
      %982 = vmatpush1.bf16.msra.mxu0 0
      %983 = vmatprep.subr.bf16.mxu0 0
      %984 = vmatpush1.bf16.msra.mxu0 0
      %985 = vmatprep.subr.bf16.mxu0 0
      %986 = vmatpush1.bf16.msra.mxu0 0
      %987 = vmatprep.mubr.bf16.mxu0 0
      %988 = vmatmul.mubr.bf16.gmra.mrb[0].mxu0 %v897
      %v989 = vpop.f32.mrb[0].mxu0
      %v990 = vadd.f32 %v937, %v989
      %v991 = vpop.f32.mrb[0].mxu0
      %v992 = vadd.f32 %v939, %v991
      %v993 = vpop.f32.mrb[0].mxu0
      %v994 = vadd.f32 %v941, %v993
      %v995 = vpop.f32.mrb[0].mxu0
      %v996 = vadd.f32 %v943, %v995
      %997 = vmatprep.mubr.bf16.mxu0 0
      %998 = vmatmul.mubr.bf16.gmra.mrb[0].mxu0 %v900
      %v999 = vpop.f32.mrb[0].mxu0
      %v1000 = vadd.f32 %v947, %v999
      %v1001 = vpop.f32.mrb[0].mxu0
      %v1002 = vadd.f32 %v949, %v1001
      %v1003 = vpop.f32.mrb[0].mxu0
      %v1004 = vadd.f32 %v951, %v1003
      %v1005 = vpop.f32.mrb[0].mxu0
      %v1006 = vadd.f32 %v953, %v1005
      %1007 = vdwg.mxu0
      %1008 = vmatprep.subr.bf16.mxu0 0
      %1009 = vmatpush1.bf16.msra.mxu0 %v814
      %1010 = vmatprep.subr.bf16.mxu0 0
      %1011 = vmatpush1.bf16.msra.mxu0 %v817
      %1012 = vmatprep.subr.bf16.mxu0 0
      %1013 = vmatpush1.bf16.msra.mxu0 %v820
      %1014 = vmatprep.subr.bf16.mxu0 0
      %1015 = vmatpush1.bf16.msra.mxu0 %v823
      %1016 = vmatprep.subr.bf16.mxu0 0
      %1017 = vmatpush1.bf16.msra.mxu0 %v826
      %1018 = vmatprep.subr.bf16.mxu0 0
      %1019 = vmatpush1.bf16.msra.mxu0 %v829
      %1020 = vmatprep.subr.bf16.mxu0 0
      %1021 = vmatpush1.bf16.msra.mxu0 %v832
      %1022 = vmatprep.subr.bf16.mxu0 0
      %1023 = vmatpush1.bf16.msra.mxu0 %v835
      %1024 = vmatprep.subr.bf16.mxu0 0
      %1025 = vmatpush1.bf16.msra.mxu0 %v838
      %1026 = vmatprep.subr.bf16.mxu0 0
      %1027 = vmatpush1.bf16.msra.mxu0 %v841
      %1028 = vmatprep.subr.bf16.mxu0 0
      %1029 = vmatpush1.bf16.msra.mxu0 %v844
      %1030 = vmatprep.subr.bf16.mxu0 0
      %1031 = vmatpush1.bf16.msra.mxu0 %v847
      %1032 = vmatprep.subr.bf16.mxu0 0
      %1033 = vmatpush1.bf16.msra.mxu0 %v850
      %1034 = vmatprep.subr.bf16.mxu0 0
      %1035 = vmatpush1.bf16.msra.mxu0 %v853
      %1036 = vmatprep.subr.bf16.mxu0 0
      %1037 = vmatpush1.bf16.msra.mxu0 %v856
      %1038 = vmatprep.subr.bf16.mxu0 0
      %1039 = vmatpush1.bf16.msra.mxu0 %v859
      %1040 = vmatprep.mubr.bf16.mxu0 %v887
      %1041 = vmatmul.mubr.bf16.gmra.mrb[0].mxu0 %v886
      %v1042 = vpop.f32.mrb[0].mxu0
      %v1043 = vadd.f32 0.0, %v1042
      %v1044 = vpop.f32.mrb[0].mxu0
      %v1045 = vpop.f32.mrb[0].mxu0
      %v1046 = vadd.f32 0.0, %v1045
      %v1047 = vpop.f32.mrb[0].mxu0
      %1048 = vmatprep.mubr.bf16.mxu0 %v890
      %1049 = vmatmul.mubr.bf16.gmra.mrb[0].mxu0 %v889
      %v1050 = vpop.f32.mrb[0].mxu0
      %v1051 = vadd.f32 0.0, %v1050
      %v1052 = vpop.f32.mrb[0].mxu0
      %v1053 = vpop.f32.mrb[0].mxu0
      %v1054 = vadd.f32 0.0, %v1053
      %v1055 = vpop.f32.mrb[0].mxu0
      %1056 = vdwg.mxu0
      %1057 = vmatprep.subr.bf16.mxu0 0
      %1058 = vmatpush1.bf16.msra.mxu0 %v862
      %1059 = vmatprep.subr.bf16.mxu0 0
      %1060 = vmatpush1.bf16.msra.mxu0 %v865
      %1061 = vmatprep.subr.bf16.mxu0 0
      %1062 = vmatpush1.bf16.msra.mxu0 0
      %1063 = vmatprep.subr.bf16.mxu0 0
      %1064 = vmatpush1.bf16.msra.mxu0 0
      %1065 = vmatprep.subr.bf16.mxu0 0
      %1066 = vmatpush1.bf16.msra.mxu0 0
      %1067 = vmatprep.subr.bf16.mxu0 0
      %1068 = vmatpush1.bf16.msra.mxu0 0
      %1069 = vmatprep.subr.bf16.mxu0 0
      %1070 = vmatpush1.bf16.msra.mxu0 0
      %1071 = vmatprep.subr.bf16.mxu0 0
      %1072 = vmatpush1.bf16.msra.mxu0 0
      %1073 = vmatprep.subr.bf16.mxu0 0
      %1074 = vmatpush1.bf16.msra.mxu0 0
      %1075 = vmatprep.subr.bf16.mxu0 0
      %1076 = vmatpush1.bf16.msra.mxu0 0
      %1077 = vmatprep.subr.bf16.mxu0 0
      %1078 = vmatpush1.bf16.msra.mxu0 0
      %1079 = vmatprep.subr.bf16.mxu0 0
      %1080 = vmatpush1.bf16.msra.mxu0 0
      %1081 = vmatprep.subr.bf16.mxu0 0
      %1082 = vmatpush1.bf16.msra.mxu0 0
      %1083 = vmatprep.subr.bf16.mxu0 0
      %1084 = vmatpush1.bf16.msra.mxu0 0
      %1085 = vmatprep.subr.bf16.mxu0 0
      %1086 = vmatpush1.bf16.msra.mxu0 0
      %1087 = vmatprep.subr.bf16.mxu0 0
      %1088 = vmatpush1.bf16.msra.mxu0 0
      %1089 = vmatprep.mubr.bf16.mxu0 0
      %1090 = vmatmul.mubr.bf16.gmra.mrb[0].mxu0 %v897
      %v1091 = vpop.f32.mrb[0].mxu0
      %v1092 = vadd.f32 %v1043, %v1091
      %v1093 = vpop.f32.mrb[0].mxu0
      %v1094 = vpop.f32.mrb[0].mxu0
      %v1095 = vadd.f32 %v1046, %v1094
      %v1096 = vpop.f32.mrb[0].mxu0
      %1097 = vmatprep.mubr.bf16.mxu0 0
      %1098 = vmatmul.mubr.bf16.gmra.mrb[0].mxu0 %v900
      %v1099 = vpop.f32.mrb[0].mxu0
      %v1100 = vadd.f32 %v1051, %v1099
      %v1101 = vpop.f32.mrb[0].mxu0
      %v1102 = vpop.f32.mrb[0].mxu0
      %v1103 = vadd.f32 %v1054, %v1102
      %v1104 = vpop.f32.mrb[0].mxu0
      %1105 = vdwg.mxu0
      %v1106 = vld [vmem:[%s3] sm:$0x7]
      %v1108 = vlaneseq
      %v1109 = vshrl.u32 %v1108, 7
      %v1110 = vsub.s32 0, %v1109
      %v1111 = vrot.slane %v1106, %v1110
      %v1112 = vlaneseq
      %v1113 = vshrl.u32 %v1112, 7
      %v1114 = vsub.s32 1, %v1113
      %v1115 = vrot.slane %v1106, %v1114
      %v1116 = vlaneseq
      %v1117 = vshrl.u32 %v1116, 7
      %v1118 = vsub.s32 2, %v1117
      %v1119 = vrot.slane %v1106, %v1118
      %v1123 = vmul.f32 %v990, %v1111
      %v1124 = vmul.f32 %v992, %v1115
      %v1125 = vmul.f32 %v1092, %v1119
      %v1126 = vmul.f32 %v994, %v1111
      %v1127 = vmul.f32 %v996, %v1115
      %v1128 = vmul.f32 %v1095, %v1119
      %v1129 = vmul.f32 %v1000, %v1111
      %v1130 = vmul.f32 %v1002, %v1115
      %v1131 = vmul.f32 %v1100, %v1119
      %v1132 = vmul.f32 %v1004, %v1111
      %v1133 = vmul.f32 %v1006, %v1115
      %v1134 = vmul.f32 %v1103, %v1119
      %v1135 = vadd.f32 %v1123, %v1124
      %v1136 = vsel %vm295, %v1125, 0.0
      %v1137 = vadd.f32 %v1135, %v1136
      %1138 = vadd.xlane.f32.xlu0 %v1137
      %v1139 = vpop.xlane.xlu0 %1138
      %v1140 = vadd.f32 %v1126, %v1127
      %v1141 = vsel %vm295, %v1128, 0.0
      %v1142 = vadd.f32 %v1140, %v1141
      %1143 = vadd.xlane.f32.xlu0 %v1142
      %v1144 = vpop.xlane.xlu0 %1143
      %v1145 = vadd.f32 %v1129, %v1130
      %v1146 = vsel %vm295, %v1131, 0.0
      %v1147 = vadd.f32 %v1145, %v1146
      %1148 = vadd.xlane.f32.xlu0 %v1147
      %v1149 = vpop.xlane.xlu0 %1148
      %v1150 = vadd.f32 %v1132, %v1133
      %v1151 = vsel %vm295, %v1134, 0.0
      %v1152 = vadd.f32 %v1150, %v1151
      %1153 = vadd.xlane.f32.xlu0 %v1152
      %v1154 = vpop.xlane.xlu0 %1153
      %v1155 = vld [vmem:[%s2] sm:$0xff]
      %v1156 = vld [vmem:[%s2 + $0x8] sm:$0xff]
      %v1157 = vld [vmem:[%s2 + $0x10] sm:$0xff]
      %v1158 = vld [vmem:[%s2 + $0x18] sm:$0xff]
      %v1160 = vsel %vm295, %v1155, 0
      %v1163 = vsel %vm295, %v1156, 0
      %v1166 = vsel %vm295, %v1157, 0
      %v1169 = vsel %vm295, %v1158, 0
      %1171 = vmatprep.subr.mxu0 0.0
      %1172 = vmatpush1.msra.mxu0 %v1139
      %1173 = vmatprep.subr.mxu0 0.0
      %1174 = vmatpush1.msra.mxu0 %v1144
      %1175 = vmatprep.subr.mxu0 0.0
      %1176 = vmatpush1.msra.mxu0 %v1149
      %1177 = vmatprep.subr.mxu0 0.0
      %1178 = vmatpush1.msra.mxu0 %v1154
      %1179 = vmatprep.subr.mxu0 0.0
      %1180 = vmatpush1.msra.mxu0 0.0
      %1181 = vmatprep.subr.mxu0 0.0
      %1182 = vmatpush1.msra.mxu0 0.0
      %1183 = vmatprep.subr.mxu0 0.0
      %1184 = vmatpush1.msra.mxu0 0.0
      %1185 = vmatprep.subr.mxu0 0.0
      %1186 = vmatpush1.msra.mxu0 0.0
      %1187 = vmatprep.subr.mxu0 0.0
      %1188 = vmatpush1.msra.mxu0 0.0
      %1189 = vmatprep.subr.mxu0 0.0
      %1190 = vmatpush1.msra.mxu0 0.0
      %1191 = vmatprep.subr.mxu0 0.0
      %1192 = vmatpush1.msra.mxu0 0.0
      %1193 = vmatprep.subr.mxu0 0.0
      %1194 = vmatpush1.msra.mxu0 0.0
      %1195 = vmatprep.subr.mxu0 0.0
      %1196 = vmatpush1.msra.mxu0 0.0
      %1197 = vmatprep.subr.mxu0 0.0
      %1198 = vmatpush1.msra.mxu0 0.0
      %1199 = vmatprep.subr.mxu0 0.0
      %1200 = vmatpush1.msra.mxu0 0.0
      %1201 = vmatprep.subr.mxu0 0.0
      %1202 = vmatpush1.msra.mxu0 0.0
      %1203 = vmatprep.subr.mxu0 0.0
      %1204 = vmatpush1.msra.mxu0 0.0
      %1205 = vmatprep.subr.mxu0 0.0
      %1206 = vmatpush1.msra.mxu0 0.0
      %1207 = vmatprep.subr.mxu0 0.0
      %1208 = vmatpush1.msra.mxu0 0.0
      %1209 = vmatprep.subr.mxu0 0.0
      %1210 = vmatpush1.msra.mxu0 0.0
      %1211 = vmatprep.subr.mxu0 0.0
      %1212 = vmatpush1.msra.mxu0 0.0
      %1213 = vmatprep.subr.mxu0 0.0
      %1214 = vmatpush1.msra.mxu0 0.0
      %1215 = vmatprep.subr.mxu0 0.0
      %1216 = vmatpush1.msra.mxu0 0.0
      %1217 = vmatprep.subr.mxu0 0.0
      %1218 = vmatpush1.msra.mxu0 0.0
      %1219 = vmatprep.subr.mxu0 0.0
      %1220 = vmatpush1.msra.mxu0 0.0
      %1221 = vmatprep.subr.mxu0 0.0
      %1222 = vmatpush1.msra.mxu0 0.0
      %1223 = vmatprep.subr.mxu0 0.0
      %1224 = vmatpush1.msra.mxu0 0.0
      %1225 = vmatprep.subr.mxu0 0.0
      %1226 = vmatpush1.msra.mxu0 0.0
      %1227 = vmatprep.subr.mxu0 0.0
      %1228 = vmatpush1.msra.mxu0 0.0
      %1229 = vmatprep.subr.mxu0 0.0
      %1230 = vmatpush1.msra.mxu0 0.0
      %1231 = vmatprep.subr.mxu0 0.0
      %1232 = vmatpush1.msra.mxu0 0.0
      %1233 = vmatprep.subr.mxu0 0.0
      %1234 = vmatpush1.msra.mxu0 0.0
      %1235 = vmatprep.mubr.f32.mxu0 0.0
      %1236 = vmatmul.mubr.f32.gmra.mrb[0].mxu0 %v1160
      %v1237 = vpop.f32.mrb[0].mxu0
      %v1238 = vadd.f32 0.0, %v1237
      %v1239 = vpop.f32.mrb[0].mxu0
      %1240 = vmatprep.mubr.f32.mxu0 0.0
      %1241 = vmatmul.mubr.f32.gmra.mrb[0].mxu0 %v1163
      %v1242 = vpop.f32.mrb[0].mxu0
      %v1243 = vadd.f32 0.0, %v1242
      %v1244 = vpop.f32.mrb[0].mxu0
      %1245 = vmatprep.mubr.f32.mxu0 0.0
      %1246 = vmatmul.mubr.f32.gmra.mrb[0].mxu0 %v1166
      %v1247 = vpop.f32.mrb[0].mxu0
      %v1248 = vadd.f32 0.0, %v1247
      %v1249 = vpop.f32.mrb[0].mxu0
      %1250 = vmatprep.mubr.f32.mxu0 0.0
      %1251 = vmatmul.mubr.f32.gmra.mrb[0].mxu0 %v1169
      %v1252 = vpop.f32.mrb[0].mxu0
      %v1253 = vadd.f32 0.0, %v1252
      %v1254 = vpop.f32.mrb[0].mxu0
      %1255 = vdwg.mxu0
      %v1256 = vrcp.pop 512.0
      %v1257 = vmul.f32 %v1238, %v1256
      %v1258 = vmul.f32 %v1243, %v1256
      %v1259 = vmul.f32 %v1248, %v1256
      %v1260 = vmul.f32 %v1253, %v1256
      %1262 = vset.pattern.permute.xlu0 0
      %1263 = vperm.xlu0 %1262, %v1257
      %v1264 = vpop.permute.xlu0 %1263
      %1267 = vset.pattern.permute.xlu0 0
      %1268 = vperm.xlu0 %1267, %v1258
      %v1269 = vpop.permute.xlu0 %1268
      %1272 = vset.pattern.permute.xlu0 0
      %1273 = vperm.xlu0 %1272, %v1259
      %v1274 = vpop.permute.xlu0 %1273
      %1277 = vset.pattern.permute.xlu0 0
      %1278 = vperm.xlu0 %1277, %v1260
      %v1279 = vpop.permute.xlu0 %1278
      %v1281 = vsub.f32 %v990, %v1264
      %v1282 = vsub.f32 %v992, %v1264
      %v1283 = vsub.f32 %v1092, %v1264
      %v1284 = vsub.f32 %v994, %v1269
      %v1285 = vsub.f32 %v996, %v1269
      %v1286 = vsub.f32 %v1095, %v1269
      %v1287 = vsub.f32 %v1000, %v1274
      %v1288 = vsub.f32 %v1002, %v1274
      %v1289 = vsub.f32 %v1100, %v1274
      %v1290 = vsub.f32 %v1004, %v1279
      %v1291 = vsub.f32 %v1006, %v1279
      %v1292 = vsub.f32 %v1103, %v1279
      %v1293 = vmul.f32 %v1281, %v1281
      %v1294 = vmul.f32 %v1282, %v1282
      %v1295 = vmul.f32 %v1283, %v1283
      %v1296 = vmul.f32 %v1284, %v1284
      %v1297 = vmul.f32 %v1285, %v1285
      %v1298 = vmul.f32 %v1286, %v1286
      %v1299 = vmul.f32 %v1287, %v1287
      %v1300 = vmul.f32 %v1288, %v1288
      %v1301 = vmul.f32 %v1289, %v1289
      %v1302 = vmul.f32 %v1290, %v1290
      %v1303 = vmul.f32 %v1291, %v1291
      %v1304 = vmul.f32 %v1292, %v1292
      %v1305 = vmul.f32 %v1293, %v1111
      %v1306 = vmul.f32 %v1294, %v1115
      %v1307 = vmul.f32 %v1295, %v1119
      %v1308 = vmul.f32 %v1296, %v1111
      %v1309 = vmul.f32 %v1297, %v1115
      %v1310 = vmul.f32 %v1298, %v1119
      %v1311 = vmul.f32 %v1299, %v1111
      %v1312 = vmul.f32 %v1300, %v1115
      %v1313 = vmul.f32 %v1301, %v1119
      %v1314 = vmul.f32 %v1302, %v1111
      %v1315 = vmul.f32 %v1303, %v1115
      %v1316 = vmul.f32 %v1304, %v1119
      %v1317 = vadd.f32 %v1305, %v1306
      %v1318 = vsel %vm295, %v1307, 0.0
      %v1319 = vadd.f32 %v1317, %v1318
      %1320 = vadd.xlane.f32.xlu0 %v1319
      %v1321 = vpop.xlane.xlu0 %1320
      %v1322 = vadd.f32 %v1308, %v1309
      %v1323 = vsel %vm295, %v1310, 0.0
      %v1324 = vadd.f32 %v1322, %v1323
      %1325 = vadd.xlane.f32.xlu0 %v1324
      %v1326 = vpop.xlane.xlu0 %1325
      %v1327 = vadd.f32 %v1311, %v1312
      %v1328 = vsel %vm295, %v1313, 0.0
      %v1329 = vadd.f32 %v1327, %v1328
      %1330 = vadd.xlane.f32.xlu0 %v1329
      %v1331 = vpop.xlane.xlu0 %1330
      %v1332 = vadd.f32 %v1314, %v1315
      %v1333 = vsel %vm295, %v1316, 0.0
      %v1334 = vadd.f32 %v1332, %v1333
      %1335 = vadd.xlane.f32.xlu0 %v1334
      %v1336 = vpop.xlane.xlu0 %1335
      %1337 = vmatprep.subr.mxu0 0.0
      %1338 = vmatpush1.msra.mxu0 %v1321
      %1339 = vmatprep.subr.mxu0 0.0
      %1340 = vmatpush1.msra.mxu0 %v1326
      %1341 = vmatprep.subr.mxu0 0.0
      %1342 = vmatpush1.msra.mxu0 %v1331
      %1343 = vmatprep.subr.mxu0 0.0
      %1344 = vmatpush1.msra.mxu0 %v1336
      %1345 = vmatprep.subr.mxu0 0.0
      %1346 = vmatpush1.msra.mxu0 0.0
      %1347 = vmatprep.subr.mxu0 0.0
      %1348 = vmatpush1.msra.mxu0 0.0
      %1349 = vmatprep.subr.mxu0 0.0
      %1350 = vmatpush1.msra.mxu0 0.0
      %1351 = vmatprep.subr.mxu0 0.0
      %1352 = vmatpush1.msra.mxu0 0.0
      %1353 = vmatprep.subr.mxu0 0.0
      %1354 = vmatpush1.msra.mxu0 0.0
      %1355 = vmatprep.subr.mxu0 0.0
      %1356 = vmatpush1.msra.mxu0 0.0
      %1357 = vmatprep.subr.mxu0 0.0
      %1358 = vmatpush1.msra.mxu0 0.0
      %1359 = vmatprep.subr.mxu0 0.0
      %1360 = vmatpush1.msra.mxu0 0.0
      %1361 = vmatprep.subr.mxu0 0.0
      %1362 = vmatpush1.msra.mxu0 0.0
      %1363 = vmatprep.subr.mxu0 0.0
      %1364 = vmatpush1.msra.mxu0 0.0
      %1365 = vmatprep.subr.mxu0 0.0
      %1366 = vmatpush1.msra.mxu0 0.0
      %1367 = vmatprep.subr.mxu0 0.0
      %1368 = vmatpush1.msra.mxu0 0.0
      %1369 = vmatprep.subr.mxu0 0.0
      %1370 = vmatpush1.msra.mxu0 0.0
      %1371 = vmatprep.subr.mxu0 0.0
      %1372 = vmatpush1.msra.mxu0 0.0
      %1373 = vmatprep.subr.mxu0 0.0
      %1374 = vmatpush1.msra.mxu0 0.0
      %1375 = vmatprep.subr.mxu0 0.0
      %1376 = vmatpush1.msra.mxu0 0.0
      %1377 = vmatprep.subr.mxu0 0.0
      %1378 = vmatpush1.msra.mxu0 0.0
      %1379 = vmatprep.subr.mxu0 0.0
      %1380 = vmatpush1.msra.mxu0 0.0
      %1381 = vmatprep.subr.mxu0 0.0
      %1382 = vmatpush1.msra.mxu0 0.0
      %1383 = vmatprep.subr.mxu0 0.0
      %1384 = vmatpush1.msra.mxu0 0.0
      %1385 = vmatprep.subr.mxu0 0.0
      %1386 = vmatpush1.msra.mxu0 0.0
      %1387 = vmatprep.subr.mxu0 0.0
      %1388 = vmatpush1.msra.mxu0 0.0
      %1389 = vmatprep.subr.mxu0 0.0
      %1390 = vmatpush1.msra.mxu0 0.0
      %1391 = vmatprep.subr.mxu0 0.0
      %1392 = vmatpush1.msra.mxu0 0.0
      %1393 = vmatprep.subr.mxu0 0.0
      %1394 = vmatpush1.msra.mxu0 0.0
      %1395 = vmatprep.subr.mxu0 0.0
      %1396 = vmatpush1.msra.mxu0 0.0
      %1397 = vmatprep.subr.mxu0 0.0
      %1398 = vmatpush1.msra.mxu0 0.0
      %1399 = vmatprep.subr.mxu0 0.0
      %1400 = vmatpush1.msra.mxu0 0.0
      %1401 = vmatprep.mubr.f32.mxu0 0.0
      %1402 = vmatmul.mubr.f32.gmra.mrb[0].mxu0 %v1160
      %v1403 = vpop.f32.mrb[0].mxu0
      %v1404 = vadd.f32 0.0, %v1403
      %v1405 = vpop.f32.mrb[0].mxu0
      %1406 = vmatprep.mubr.f32.mxu0 0.0
      %1407 = vmatmul.mubr.f32.gmra.mrb[0].mxu0 %v1163
      %v1408 = vpop.f32.mrb[0].mxu0
      %v1409 = vadd.f32 0.0, %v1408
      %v1410 = vpop.f32.mrb[0].mxu0
      %1411 = vmatprep.mubr.f32.mxu0 0.0
      %1412 = vmatmul.mubr.f32.gmra.mrb[0].mxu0 %v1166
      %v1413 = vpop.f32.mrb[0].mxu0
      %v1414 = vadd.f32 0.0, %v1413
      %v1415 = vpop.f32.mrb[0].mxu0
      %1416 = vmatprep.mubr.f32.mxu0 0.0
      %1417 = vmatmul.mubr.f32.gmra.mrb[0].mxu0 %v1169
      %v1418 = vpop.f32.mrb[0].mxu0
      %v1419 = vadd.f32 0.0, %v1418
      %v1420 = vpop.f32.mrb[0].mxu0
      %1421 = vdwg.mxu0
      %v1422 = vmul.f32 %v1404, %v1256
      %v1423 = vmul.f32 %v1409, %v1256
      %v1424 = vmul.f32 %v1414, %v1256
      %v1425 = vmul.f32 %v1419, %v1256
      %v1426 = vadd.f32 %v1422, 1e-06
      %v1427 = vadd.f32 %v1423, 1e-06
      %v1428 = vadd.f32 %v1424, 1e-06
      %v1429 = vadd.f32 %v1425, 1e-06
      %v1430 = vrsqrt.pop %v1426
      %v1431 = vrsqrt.pop %v1427
      %v1432 = vrsqrt.pop %v1428
      %v1433 = vrsqrt.pop %v1429
      %1435 = vset.pattern.permute.xlu0 0
      %1436 = vperm.xlu0 %1435, %v1430
      %v1437 = vpop.permute.xlu0 %1436
      %1440 = vset.pattern.permute.xlu0 0
      %1441 = vperm.xlu0 %1440, %v1431
      %v1442 = vpop.permute.xlu0 %1441
      %1445 = vset.pattern.permute.xlu0 0
      %1446 = vperm.xlu0 %1445, %v1432
      %v1447 = vpop.permute.xlu0 %1446
      %1450 = vset.pattern.permute.xlu0 0
      %1451 = vperm.xlu0 %1450, %v1433
      %v1452 = vpop.permute.xlu0 %1451
      %v1454 = vmul.f32 %v1281, %v1437
      %v1455 = vmul.f32 %v1282, %v1437
      %v1456 = vmul.f32 %v1283, %v1437
      %v1457 = vmul.f32 %v1284, %v1442
      %v1458 = vmul.f32 %v1285, %v1442
      %v1459 = vmul.f32 %v1286, %v1442
      %v1460 = vmul.f32 %v1287, %v1447
      %v1461 = vmul.f32 %v1288, %v1447
      %v1462 = vmul.f32 %v1289, %v1447
      %v1463 = vmul.f32 %v1290, %v1452
      %v1464 = vmul.f32 %v1291, %v1452
      %v1465 = vmul.f32 %v1292, %v1452
      %v1466 = vld [vmem:[%s4] sm:$0xff]
      %v1467 = vld [vmem:[%s4 + $0x8] sm:$0xff]
      %v1468 = vld [vmem:[%s4 + $0x10] sm:$0xff]
      %v1469 = vld [vmem:[%s4 + $0x18] sm:$0xff]
      %1471 = vset.pattern.permute.xlu0 0
      %1472 = vperm.xlu0 %1471, %v1466
      %v1473 = vpop.permute.xlu0 %1472
      %1476 = vset.pattern.permute.xlu0 0
      %1477 = vperm.xlu0 %1476, %v1467
      %v1478 = vpop.permute.xlu0 %1477
      %1481 = vset.pattern.permute.xlu0 0
      %1482 = vperm.xlu0 %1481, %v1468
      %v1483 = vpop.permute.xlu0 %1482
      %1486 = vset.pattern.permute.xlu0 0
      %1487 = vperm.xlu0 %1486, %v1469
      %v1488 = vpop.permute.xlu0 %1487
      %v1490 = vmul.f32 %v1454, %v1473
      %v1491 = vmul.f32 %v1455, %v1473
      %v1492 = vmul.f32 %v1456, %v1473
      %v1493 = vmul.f32 %v1457, %v1478
      %v1494 = vmul.f32 %v1458, %v1478
      %v1495 = vmul.f32 %v1459, %v1478
      %v1496 = vmul.f32 %v1460, %v1483
      %v1497 = vmul.f32 %v1461, %v1483
      %v1498 = vmul.f32 %v1462, %v1483
      %v1499 = vmul.f32 %v1463, %v1488
      %v1500 = vmul.f32 %v1464, %v1488
      %v1501 = vmul.f32 %v1465, %v1488
      %v1502 = vld [vmem:[%s5] sm:$0xff]
      %v1503 = vld [vmem:[%s5 + $0x8] sm:$0xff]
      %v1504 = vld [vmem:[%s5 + $0x10] sm:$0xff]
      %v1505 = vld [vmem:[%s5 + $0x18] sm:$0xff]
      %1507 = vset.pattern.permute.xlu0 0
      %1508 = vperm.xlu0 %1507, %v1502
      %v1509 = vpop.permute.xlu0 %1508
      %1512 = vset.pattern.permute.xlu0 0
      %1513 = vperm.xlu0 %1512, %v1503
      %v1514 = vpop.permute.xlu0 %1513
      %1517 = vset.pattern.permute.xlu0 0
      %1518 = vperm.xlu0 %1517, %v1504
      %v1519 = vpop.permute.xlu0 %1518
      %1522 = vset.pattern.permute.xlu0 0
      %1523 = vperm.xlu0 %1522, %v1505
      %v1524 = vpop.permute.xlu0 %1523
      %v1526 = vadd.f32 %v1490, %v1509
      %v1527 = vadd.f32 %v1491, %v1509
      %v1528 = vadd.f32 %v1492, %v1509
      %v1529 = vadd.f32 %v1493, %v1514
      %v1530 = vadd.f32 %v1494, %v1514
      %v1531 = vadd.f32 %v1495, %v1514
      %v1532 = vadd.f32 %v1496, %v1519
      %v1533 = vadd.f32 %v1497, %v1519
      %v1534 = vadd.f32 %v1498, %v1519
      %v1535 = vadd.f32 %v1499, %v1524
      %v1536 = vadd.f32 %v1500, %v1524
      %v1537 = vadd.f32 %v1501, %v1524
      %vm1538 = vcmp.ge.f32.partialorder %v1526, 0.0
      %vm1539 = vcmp.ge.f32.partialorder %v1527, 0.0
      %vm1540 = vcmp.ge.f32.partialorder %v1528, 0.0
      %vm1541 = vcmp.ge.f32.partialorder %v1529, 0.0
      %vm1542 = vcmp.ge.f32.partialorder %v1530, 0.0
      %vm1543 = vcmp.ge.f32.partialorder %v1531, 0.0
      %vm1544 = vcmp.ge.f32.partialorder %v1532, 0.0
      %vm1545 = vcmp.ge.f32.partialorder %v1533, 0.0
      %vm1546 = vcmp.ge.f32.partialorder %v1534, 0.0
      %vm1547 = vcmp.ge.f32.partialorder %v1535, 0.0
      %vm1548 = vcmp.ge.f32.partialorder %v1536, 0.0
      %vm1549 = vcmp.ge.f32.partialorder %v1537, 0.0
      %v1550 = vmul.f32 %v1526, 0.01
      %v1551 = vmul.f32 %v1527, 0.01
      %v1552 = vmul.f32 %v1528, 0.01
      %v1553 = vmul.f32 %v1529, 0.01
      %v1554 = vmul.f32 %v1530, 0.01
      %v1555 = vmul.f32 %v1531, 0.01
      %v1556 = vmul.f32 %v1532, 0.01
      %v1557 = vmul.f32 %v1533, 0.01
      %v1558 = vmul.f32 %v1534, 0.01
      %v1559 = vmul.f32 %v1535, 0.01
      %v1560 = vmul.f32 %v1536, 0.01
      %v1561 = vmul.f32 %v1537, 0.01
      %v1562 = vsel %vm1538, %v1526, %v1550
      %v1563 = vsel %vm1539, %v1527, %v1551
      %v1564 = vsel %vm1540, %v1528, %v1552
      %v1565 = vsel %vm1541, %v1529, %v1553
      %v1566 = vsel %vm1542, %v1530, %v1554
      %v1567 = vsel %vm1543, %v1531, %v1555
      %v1568 = vsel %vm1544, %v1532, %v1556
      %v1569 = vsel %vm1545, %v1533, %v1557
      %v1570 = vsel %vm1546, %v1534, %v1558
      %v1571 = vsel %vm1547, %v1535, %v1559
      %v1572 = vsel %vm1548, %v1536, %v1560
      %v1573 = vsel %vm1549, %v1537, %v1561
      %1574 = vst [vmem:[%s251] sm:$0xff] %v1562
      %1575 = vst [vmem:[%s251 + $0x8] sm:$0xff] %v1563
      %1576 = vst.msk [vmem:[%s251 + $0x10] sm:$0xff] %vm295, %v1564
      %1577 = vst [vmem:[%s251 + $0x18] sm:$0xff] %v1565
      %1578 = vst [vmem:[%s251 + $0x20] sm:$0xff] %v1566
      %1579 = vst.msk [vmem:[%s251 + $0x28] sm:$0xff] %vm295, %v1567
      %1580 = vst [vmem:[%s251 + $0x30] sm:$0xff] %v1568
      %1581 = vst [vmem:[%s251 + $0x38] sm:$0xff] %v1569
      %1582 = vst.msk [vmem:[%s251 + $0x40] sm:$0xff] %vm295, %v1570
      %1583 = vst [vmem:[%s251 + $0x48] sm:$0xff] %v1571
      %1584 = vst [vmem:[%s251 + $0x50] sm:$0xff] %v1572
      %1585 = vst.msk [vmem:[%s251 + $0x58] sm:$0xff] %vm295, %v1573
      %p1586 = scmp.lt.s32.totalorder %s17, 1
      %s1587 = scalar_select %p1586, %s17, 1
      %s1588 = smul.addr %s1587, 12
      %s1589 = smul.addr %s1588, 8
      %s1590 = scalar_lea.vmem %s6, %s1589
      // Predicated region
      $region45: #{concat_gn_forward.1} parent=43 // pred_check
        %p1591 = pneg %p166
      $region46: #{concat_gn_forward.1} parent=43 // pred_check_branch
        %1593 = sbr.rel (%p1591) target = $region48
      $region47: #{concat_gn_forward.1} parent=43 // pred_region
        _
      $region48: #{concat_gn_forward.1} parent=43 // pred_fallthru
        _
    $region44: #{concat_gn_forward.1} parent=5 // pred_fallthru
      _
    %p1594 = scmp.le.s32.totalorder 2, %s12
    // Predicated region
    $region49: #{concat_gn_forward.1} parent=5 // pred_check
      %p1595 = pneg %p1594
    $region50: #{concat_gn_forward.1} parent=5 // pred_check_branch
      %1597 = sbr.rel (%p1595) target = $region52
    $region51: #{concat_gn_forward.1} parent=5 // pred_region
      %s1598 = ssub.s32 %s12, 2
      // Predicated region
      $region53: #{concat_gn_forward.1} parent=51 // pred_check
        %p1599 = pneg %p172
      $region54: #{concat_gn_forward.1} parent=51 // pred_check_branch
        %1601 = sbr.rel (%p1599) target = $region56
      $region55: #{concat_gn_forward.1} parent=51 // pred_region
        %p1602 = scmp.lt.s32.totalorder %s18, 1
        %s1603 = scalar_select %p1602, %s18, 1
        %s1604 = smul.addr %s1603, 12
        %s1605 = smul.addr %s1604, 8
        %s1606 = scalar_lea.vmem %s6, %s1605
      $region56: #{concat_gn_forward.1} parent=51 // pred_fallthru
        _
    $region52: #{concat_gn_forward.1} parent=5 // pred_fallthru
      _
  $region6: #{concat_gn_forward.1} parent=0 // loop_footer
    %s16 = sadd.s32 1, %s12
  $region7: #{concat_gn_forward.1} parent=0 // loop_footer_branch
    %11 = sbr.rel target = $region3
  $region8: #{concat_gn_forward.1} parent=0 // loop_exit
    _

</llo_original>
